<compile_context>
chip_gen: v7x
topology: tpu7x:2x2x1
jax: 0.10.0
libtpu: 0.0.40
codegen_flags: <defaults>
</compile_context>

<pallas_src>
import functools

import jax
import jax.numpy as jnp
import numpy as np
from jax import lax
from jax.experimental import pallas as pl
from jax.experimental.pallas import tpu as pltpu

NEG_INF = -1e30  # stand-in for torch's -INF proximity_mask_val (exp underflows to exact 0)


def _round_up(x, m):
    return (x + m - 1) // m * m


def _side_info(lens_ref, b0, nb, seq_len, m):
    """Index / mask tensors for one side of the flattened (nb*seq_len) layout.

    Built purely from 2-D minor-dim iotas + scalar SMEM reads of the prefetched lengths.

    Returns:
      brow:    (m, 1)   int32 -- local batch id of each flattened row (source role)
      bcol:    (1, m)   int32 -- local batch id of each flattened column (target role)
      colmask: (1, m)   bool  -- True where the flattened column is a real (unmasked) position
      pos:     (m, 1)   f32   -- within-sequence position of each flattened row
      sel:     (128, m) f32   -- sel[b, i] = 1 iff row i is a real position of local batch b
                                 (batch padded to 128 lanes so the final store is lane-dense)
    """
    col = lax.broadcasted_iota(jnp.int32, (1, m), 1)
    row = lax.broadcasted_iota(jnp.int32, (m, 1), 0)

    def batch_of(x):  # integer-division-free batch index
        b = jnp.zeros_like(x)
        for k in range(1, nb):
            b = b + (x >= k * seq_len).astype(jnp.int32)
        return b

    bcol = batch_of(col)
    brow = batch_of(row)
    pos = (row - brow * seq_len).astype(jnp.float32)

    len_col = jnp.zeros((1, m), jnp.int32)
    for i in range(nb):
        len_col = jnp.where(bcol == i, lens_ref[b0 + i], len_col)
    colmask = (col - bcol * seq_len) < len_col

    # (128, m) per-batch selection matrix (lanes >= nb stay all-zero -> zero loss lanes).
    blane = lax.broadcasted_iota(jnp.int32, (128, 1), 0)
    len_b = jnp.zeros((128, 1), jnp.int32)
    for i in range(nb):
        len_b = jnp.where(blane == i, lens_ref[b0 + i], len_b)
    rel = col - blane * seq_len                       # (128, m)
    sel = ((rel >= 0) & (rel < len_b)).astype(jnp.float32)
    return brow, bcol, colmask, pos, sel


def _cc_kernel(clens_ref, slens_ref, clip_ref, sent_ref, loss_ref, *,
               nb, lc, ls, inv_d, fold, lane_c, lane_s, matmul_dtype):
    b0 = pl.program_id(0) * nb
    c = clip_ref[0]   # (nb*lc, dp) resident matmul_dtype (bias lanes folded in the wrapper)
    s = sent_ref[0]   # (nb*ls, dp)
    dp = c.shape[-1]
    mc = nb * lc
    ms = nb * ls

    c_brow, c_bcol, c_cmask, c_pos, c_sel = _side_info(clens_ref, b0, nb, lc, mc)
    s_brow, s_bcol, s_cmask, s_pos, s_sel = _side_info(slens_ref, b0, nb, ls, ms)

    if fold:
        c_sq = s_sq = None                       # norms live in the padded K lanes
    else:
        cf = c.astype(jnp.float32)
        sf = s.astype(jnp.float32)
        c_sq = jnp.transpose(jnp.sum(cf * cf, axis=-1, keepdims=True))  # (1, mc)
        s_sq = jnp.transpose(jnp.sum(sf * sf, axis=-1, keepdims=True))  # (1, ms)

    lane = lax.broadcasted_iota(jnp.int32, (1, dp), 1)

    def soft_weights(src_mm, tgt_mm, pmask, tgt_sq):
        # proximity = -mean_d (src - tgt)^2.  With folding, the single MXU matmul already
        # includes -0.5*(||src||^2 + ||tgt||^2) via the bias lanes; otherwise the per-source
        # ||src||^2 term is dropped (softmax is invariant to per-row constants).
        ab = jnp.einsum('md,nd->mn', src_mm, tgt_mm, preferred_element_type=jnp.float32)
        if tgt_sq is None:
            dist = (2.0 * inv_d) * ab
        else:
            dist = (2.0 * ab - tgt_sq) * inv_d
        dist = jnp.where(pmask, dist, NEG_INF)        # cross-batch & masked targets -> weight 0
        mx = jnp.max(dist, axis=-1, keepdims=True)
        e = jnp.exp(dist - mx)
        denom = jnp.sum(e, axis=-1, keepdims=True)
        return e * pl.reciprocal(denom, approx=True)  # softmax (temp=1); divide on the EUP slot

    def cycle(src, src_brow, src_bcol, src_cmask, src_pos, src_sel, src_sq, own_lane,
              tgt, tgt_bcol, tgt_cmask, tgt_sq):
        # hop 1: src -> tgt soft nearest neighbours
        w1 = soft_weights(src, tgt, (src_brow == tgt_bcol) & tgt_cmask, tgt_sq)
        nn = jnp.dot(w1.astype(matmul_dtype), tgt, preferred_element_type=jnp.float32)
        if fold:
            # Make the cycled rows an exact "source selector" for src's bias lane in hop 2.
            nn = jnp.where(lane == own_lane, 1.0, nn)
        # hop 2: nn -> src, weights only (the cycled embedding itself is never needed)
        beta = soft_weights(nn.astype(matmul_dtype), src,
                            (src_brow == src_bcol) & src_cmask, src_sq)
        # "index simple" loss: soft index via an MXU matvec, masked per-batch sum via another.
        index_nn = jnp.dot(beta, src_pos, preferred_element_type=jnp.float32)   # (m, 1)
        diff2 = (index_nn - src_pos) ** 2
        per_b = jnp.dot(src_sel, diff2, preferred_element_type=jnp.float32)     # (128, 1)
        return jnp.transpose(per_b)                                             # (1, 128)

    closs = cycle(c, c_brow, c_bcol, c_cmask, c_pos, c_sel, c_sq, lane_c,
                  s, s_bcol, s_cmask, s_sq)
    sloss = cycle(s, s_brow, s_bcol, s_cmask, s_pos, s_sel, s_sq, lane_s,
                  c, c_bcol, c_cmask, c_sq)

    # Single lane-dense (1, 2, 128) store: row 0 = clip sums, row 1 = sent sums.
    loss_ref[...] = jnp.concatenate([closs, sloss], axis=0)[None]


def cycle_consistency_loss(clip_emb, clip_mask, clip_lens, sent_emb, sent_mask, sent_lens,
                           *, batch_block=None, matmul_dtype=jnp.bfloat16, target_rows=256):
    """Forward of CycleConsistencyLoss (default config: weight_index_simple=1,
    weight_index_gauss=0, softmax_temp=1, compute_half_cycles=False).

    clip_mask / sent_mask use the PyTorch convention (True = masked).
    """
    # TODO(synk): masks are assumed to be the standard length masks (i >= len) and are rebuilt
    # in-kernel from the scalar-prefetched lengths; arbitrary non-contiguous masks are not
    # supported by this fast path.
    del clip_mask, sent_mask

    B, Lc, D = clip_emb.shape
    _, Ls, _ = sent_emb.shape

    lcp = _round_up(Lc, 8)               # sublane-aligned per-sequence segments
    lsp = _round_up(Ls, 8)
    dp = _round_up(D, 128)               # lane-dense feature dim for the vregs / MXU K dim
    fold = (dp - D) >= 2                 # norm-bias lanes fit in the existing zero padding
    lane_c, lane_s = D, D + 1            # clip / sent bias lanes (only used when fold)

    # Size the batch packing to the MXU: waste from fully-masked cross-batch work is bounded
    # to one hardware row-tile, and for L_pad >= target_rows we process one batch per step.
    nb = max(1, target_rows // max(lcp, lsp))
    nb = min(nb, B)
    if B >= 2:
        nb = min(nb, -(-B // 2))         # >= 2 grid steps so both v7x TensorCores get work
    if batch_block is not None:
        nb = max(1, min(nb, batch_block))
    bp = _round_up(B, nb)
    num_blocks = bp // nb

    def prep(x, l_pad, self_lane, other_lane):
        x = x.astype(jnp.float32)
        x = jnp.pad(x, ((0, bp - B), (0, l_pad - x.shape[1]), (0, 0)))
        if fold:
            sq = jnp.sum(x * x, axis=-1)                              # (bp, l_pad), f32
            extra = jnp.zeros((bp, l_pad, dp - D), jnp.float32)
            extra = extra.at[..., self_lane - D].set(-0.5 * sq)       # target-role norm bias
            extra = extra.at[..., other_lane - D].set(1.0)            # source-role selector
            x = jnp.concatenate([x, extra], axis=-1)
        else:
            x = jnp.pad(x, ((0, 0), (0, 0), (0, dp - D)))
        # Resident in matmul_dtype (bf16 by default): halves input DMA + double-buffer bytes.
        return x.astype(matmul_dtype).reshape(num_blocks, nb * l_pad, dp)

    clip_p = prep(clip_emb, lcp, lane_c, lane_s)
    sent_p = prep(sent_emb, lsp, lane_s, lane_c)
    clens_p = jnp.pad(clip_lens.astype(jnp.int32), (0, bp - B))
    slens_p = jnp.pad(sent_lens.astype(jnp.int32), (0, bp - B))

    kernel = functools.partial(_cc_kernel, nb=nb, lc=lcp, ls=lsp, inv_d=1.0 / D,
                               fold=fold, lane_c=lane_c, lane_s=lane_s,
                               matmul_dtype=matmul_dtype)

    # Explicit VMEM budget: double-buffered bf16 input tiles + live f32 intermediates,
    # floored at 32 MiB (v5e's scoped default is only 16 MiB) and capped v7x-safe.
    itemsize = jnp.dtype(matmul_dtype).itemsize
    m_max = nb * max(lcp, lsp)
    est = (2 * nb * (lcp + lsp) * dp * itemsize       # 2x double-buffered input tiles
           + 6 * m_max * m_max * 4                    # dist / e / w1 / beta (f32, two live sets)
           + 3 * m_max * dp * 4)                      # nn accumulator + operand casts
    vmem_limit = int(min(max(2 * est, 32 * 1024 * 1024), 56 * 1024 * 1024))

    loss = pl.pallas_call(
        kernel,
        out_shape=jax.ShapeDtypeStruct((num_blocks, 2, 128), jnp.float32),
        grid_spec=pltpu.PrefetchScalarGridSpec(
            num_scalar_prefetch=2,
            grid=(num_blocks,),
            in_specs=[
                pl.BlockSpec((1, nb * lcp, dp), lambda g, cl, sl: (g, 0, 0)),
                pl.BlockSpec((1, nb * lsp, dp), lambda g, cl, sl: (g, 0, 0)),
            ],
            out_specs=pl.BlockSpec((1, 2, 128), lambda g, cl, sl: (g, 0, 0)),
        ),
        compiler_params=pltpu.CompilerParams(
            dimension_semantics=("parallel",),
            vmem_limit_bytes=vmem_limit),
    )(clens_p, slens_p, clip_p, sent_p)

    csum = loss[:, 0, :nb].reshape(bp)[:B]     # per-batch masked sums of the index loss
    ssum = loss[:, 1, :nb].reshape(bp)[:B]
    clip_clip_loss = jnp.mean(csum / clip_lens.astype(jnp.float32))
    sent_sent_loss = jnp.mean(ssum / sent_lens.astype(jnp.float32))

    # TODO(synk): torch's num_samples=1 branch draws one real position per batch with
    # th.multinomial (stochastic); we implement the deterministic num_samples=-1 path
    # (masked mean over the sequence), which is its expectation.
    # compute_half_cycles=False by default -> clip_sent_loss / sent_clip_loss are None.
    return clip_clip_loss, sent_sent_loss, None, None


def _ref(clip_emb, clip_mask, clip_lens, sent_emb, sent_mask, sent_lens):
    """Pure-JAX reference mirroring the PyTorch code (torch-style -inf masking)."""
    cm = (~clip_mask).astype(jnp.float32)
    sm = (~sent_mask).astype(jnp.float32)

    def soft_nn(src, srcm, tgt, tgtm):
        dist = -jnp.mean((src[:, :, None, :] - tgt[:, None, :, :]) ** 2, axis=-1)
        pm = srcm[:, :, None] * tgtm[:, None, :]
        dist = jnp.where(pm > 0, dist, -jnp.inf)
        w = jax.nn.softmax(dist, axis=-1)
        nn = jnp.einsum('bst,btd->bsd', w, tgt)
        return nn, w

    def side_loss(emb, m, lens, other, om):
        nn1, _ = soft_nn(emb, m, other, om)
        _, beta = soft_nn(nn1, m, emb, m)
        L = emb.shape[1]
        idx = jnp.arange(L, dtype=jnp.float32)
        index_nn = jnp.sum(idx[None, None, :] * beta, axis=-1)
        loss_simple = jnp.where(m > 0, (index_nn - idx[None, :]) ** 2, 0.0)
        return jnp.mean(jnp.sum(loss_simple, axis=-1) / lens.astype(jnp.float32))

    return (side_loss(clip_emb, cm, clip_lens, sent_emb, sm),
            side_loss(sent_emb, sm, sent_lens, clip_emb, cm))


if __name__ == "__main__":
    B, Lc, Ls, D = 2, 8, 8, 32
    key = jax.random.PRNGKey(0)
    k1, k2 = jax.random.split(key)
    clip_emb = jax.random.normal(k1, (B, Lc, D), dtype=jnp.float32)
    sent_emb = jax.random.normal(k2, (B, Ls, D), dtype=jnp.float32)
    clip_lens = jnp.array([Lc, 5], dtype=jnp.int32)
    sent_lens = jnp.array([Ls, 6], dtype=jnp.int32)
    clip_mask = jnp.arange(Lc)[None, :] >= clip_lens[:, None]   # True = masked
    sent_mask = jnp.arange(Ls)[None, :] >= sent_lens[:, None]

    ref_c, ref_s = _ref(clip_emb, clip_mask, clip_lens, sent_emb, sent_mask, sent_lens)

    # Default path: bf16 MXU operands (full-rate on v6e/v7x), f32 accumulation. Tolerance
    # loosened for bf16 operand rounding through two soft-NN hops plus the EUP approx recip.
    cc, ss, _, _ = cycle_consistency_loss(clip_emb, clip_mask, clip_lens,
                                          sent_emb, sent_mask, sent_lens)
    jax.block_until_ready((cc, ss))
    np.testing.assert_allclose(np.asarray(cc), np.asarray(ref_c), rtol=8e-2, atol=8e-2)
    np.testing.assert_allclose(np.asarray(ss), np.asarray(ref_s), rtol=8e-2, atol=8e-2)

    # f32-operand path: tighter check (residual error is the approximate reciprocal only).
    cc32, ss32, _, _ = cycle_consistency_loss(clip_emb, clip_mask, clip_lens,
                                              sent_emb, sent_mask, sent_lens,
                                              matmul_dtype=jnp.float32)
    jax.block_until_ready((cc32, ss32))
    np.testing.assert_allclose(np.asarray(cc32), np.asarray(ref_c), rtol=2e-2, atol=2e-2)
    np.testing.assert_allclose(np.asarray(ss32), np.asarray(ref_s), rtol=2e-2, atol=2e-2)

    print("KERNEL_OK")
</pallas_src>

<mosaic_0001>
module attributes {stable_mosaic.version = 11 : i64} {
  func.func @_cc_kernel(%arg0: i32, %arg1: memref<2xi32, #tpu.memory_space<smem>>, %arg2: memref<2xi32, #tpu.memory_space<smem>>, %arg3: memref<1x8x128xbf16, #tpu.memory_space<vmem>>, %arg4: memref<1x8x128xbf16, #tpu.memory_space<vmem>>, %arg5: memref<1x2x128xf32, #tpu.memory_space<vmem>>) attributes {dimension_semantics = [#tpu.dimension_semantics<parallel>], iteration_bounds = array<i64: 2>, scalar_prefetch = 2 : i64, scratch_operands = 0 : i64, tpu.core_type = #tpu.core_type<tc>, window_params = [{transform_indices = @transform_0, window_bounds = array<i64: 1, 8, 128>}, {transform_indices = @transform_1, window_bounds = array<i64: 1, 8, 128>}, {transform_indices = @transform_2, window_bounds = array<i64: 1, 2, 128>}]} {
    %c1_i32 = arith.constant 1 : i32
    %0 = arith.muli %arg0, %c1_i32 : i32
    %c0 = arith.constant 0 : index
    %c0_0 = arith.constant 0 : index
    %c0_1 = arith.constant 0 : index
    %1 = vector.load %arg3[%c0, %c0_0, %c0_1] : memref<1x8x128xbf16, #tpu.memory_space<vmem>>, vector<1x8x128xbf16>
    %2 = vector.shape_cast %1 : vector<1x8x128xbf16> to vector<8x128xbf16>
    %c0_2 = arith.constant 0 : index
    %c0_3 = arith.constant 0 : index
    %c0_4 = arith.constant 0 : index
    %3 = vector.load %arg4[%c0_2, %c0_3, %c0_4] : memref<1x8x128xbf16, #tpu.memory_space<vmem>>, vector<1x8x128xbf16>
    %4 = vector.shape_cast %3 : vector<1x8x128xbf16> to vector<8x128xbf16>
    %5 = tpu.iota {dimensions = array<i32: 1>} : vector<1x8xi32>
    %6 = tpu.iota {dimensions = array<i32: 0>} : vector<8x1xi32>
    %c0_i32 = arith.constant 0 : i32
    %7 = vector.broadcast %c0_i32 : i32 to vector<1x8xi32>
    %c0_i32_5 = arith.constant 0 : i32
    %8 = vector.broadcast %c0_i32_5 : i32 to vector<8x1xi32>
    %c8_i32 = arith.constant 8 : i32
    %9 = vector.broadcast %c8_i32 : i32 to vector<8x1xi32>
    %10 = arith.muli %8, %9 : vector<8x1xi32>
    %11 = arith.subi %6, %10 : vector<8x1xi32>
    %12 = arith.sitofp %11 : vector<8x1xi32> to vector<8x1xf32>
    %c0_i32_6 = arith.constant 0 : i32
    %13 = vector.broadcast %c0_i32_6 : i32 to vector<1x8xi32>
    %c0_i32_7 = arith.constant 0 : i32
    %14 = vector.broadcast %c0_i32_7 : i32 to vector<1x8xi32>
    %15 = arith.cmpi eq, %7, %14 : vector<1x8xi32>
    %c0_i32_8 = arith.constant 0 : i32
    %16 = arith.addi %0, %c0_i32_8 : i32
    %17 = arith.index_cast %16 : i32 to index
    %18 = memref.load %arg1[%17] : memref<2xi32, #tpu.memory_space<smem>>
    %19 = vector.broadcast %18 : i32 to vector<1x8xi32>
    %20 = arith.select %15, %19, %13 : vector<1x8xi1>, vector<1x8xi32>
    %c8_i32_9 = arith.constant 8 : i32
    %21 = vector.broadcast %c8_i32_9 : i32 to vector<1x8xi32>
    %22 = arith.muli %7, %21 : vector<1x8xi32>
    %23 = arith.subi %5, %22 : vector<1x8xi32>
    %24 = arith.cmpi slt, %23, %20 : vector<1x8xi32>
    %25 = tpu.iota {dimensions = array<i32: 0>} : vector<128x1xi32>
    %c0_i32_10 = arith.constant 0 : i32
    %26 = vector.broadcast %c0_i32_10 : i32 to vector<128x1xi32>
    %c0_i32_11 = arith.constant 0 : i32
    %27 = vector.broadcast %c0_i32_11 : i32 to vector<128x1xi32>
    %28 = arith.cmpi eq, %25, %27 : vector<128x1xi32>
    %c0_i32_12 = arith.constant 0 : i32
    %29 = arith.addi %0, %c0_i32_12 : i32
    %30 = arith.index_cast %29 : i32 to index
    %31 = memref.load %arg1[%30] : memref<2xi32, #tpu.memory_space<smem>>
    %32 = vector.broadcast %31 : i32 to vector<128x1xi32>
    %33 = arith.select %28, %32, %26 : vector<128x1xi1>, vector<128x1xi32>
    %c8_i32_13 = arith.constant 8 : i32
    %34 = vector.broadcast %c8_i32_13 : i32 to vector<128x1xi32>
    %35 = arith.muli %25, %34 : vector<128x1xi32>
    %36 = vector.broadcast %5 : vector<1x8xi32> to vector<128x8xi32>
    %37 = vector.broadcast %35 : vector<128x1xi32> to vector<128x8xi32>
    %38 = arith.subi %36, %37 : vector<128x8xi32>
    %c0_i32_14 = arith.constant 0 : i32
    %39 = vector.broadcast %c0_i32_14 : i32 to vector<128x8xi32>
    %40 = arith.cmpi sge, %38, %39 : vector<128x8xi32>
    %41 = vector.broadcast %33 : vector<128x1xi32> to vector<128x8xi32>
    %42 = arith.cmpi slt, %38, %41 : vector<128x8xi32>
    %43 = arith.andi %40, %42 : vector<128x8xi1>
    %44 = arith.extui %43 : vector<128x8xi1> to vector<128x8xi32>
    %45 = arith.sitofp %44 : vector<128x8xi32> to vector<128x8xf32>
    %46 = tpu.iota {dimensions = array<i32: 1>} : vector<1x8xi32>
    %47 = tpu.iota {dimensions = array<i32: 0>} : vector<8x1xi32>
    %c0_i32_15 = arith.constant 0 : i32
    %48 = vector.broadcast %c0_i32_15 : i32 to vector<1x8xi32>
    %c0_i32_16 = arith.constant 0 : i32
    %49 = vector.broadcast %c0_i32_16 : i32 to vector<8x1xi32>
    %c8_i32_17 = arith.constant 8 : i32
    %50 = vector.broadcast %c8_i32_17 : i32 to vector<8x1xi32>
    %51 = arith.muli %49, %50 : vector<8x1xi32>
    %52 = arith.subi %47, %51 : vector<8x1xi32>
    %53 = arith.sitofp %52 : vector<8x1xi32> to vector<8x1xf32>
    %c0_i32_18 = arith.constant 0 : i32
    %54 = vector.broadcast %c0_i32_18 : i32 to vector<1x8xi32>
    %c0_i32_19 = arith.constant 0 : i32
    %55 = vector.broadcast %c0_i32_19 : i32 to vector<1x8xi32>
    %56 = arith.cmpi eq, %48, %55 : vector<1x8xi32>
    %c0_i32_20 = arith.constant 0 : i32
    %57 = arith.addi %0, %c0_i32_20 : i32
    %58 = arith.index_cast %57 : i32 to index
    %59 = memref.load %arg2[%58] : memref<2xi32, #tpu.memory_space<smem>>
    %60 = vector.broadcast %59 : i32 to vector<1x8xi32>
    %61 = arith.select %56, %60, %54 : vector<1x8xi1>, vector<1x8xi32>
    %c8_i32_21 = arith.constant 8 : i32
    %62 = vector.broadcast %c8_i32_21 : i32 to vector<1x8xi32>
    %63 = arith.muli %48, %62 : vector<1x8xi32>
    %64 = arith.subi %46, %63 : vector<1x8xi32>
    %65 = arith.cmpi slt, %64, %61 : vector<1x8xi32>
    %66 = tpu.iota {dimensions = array<i32: 0>} : vector<128x1xi32>
    %c0_i32_22 = arith.constant 0 : i32
    %67 = vector.broadcast %c0_i32_22 : i32 to vector<128x1xi32>
    %c0_i32_23 = arith.constant 0 : i32
    %68 = vector.broadcast %c0_i32_23 : i32 to vector<128x1xi32>
    %69 = arith.cmpi eq, %66, %68 : vector<128x1xi32>
    %c0_i32_24 = arith.constant 0 : i32
    %70 = arith.addi %0, %c0_i32_24 : i32
    %71 = arith.index_cast %70 : i32 to index
    %72 = memref.load %arg2[%71] : memref<2xi32, #tpu.memory_space<smem>>
    %73 = vector.broadcast %72 : i32 to vector<128x1xi32>
    %74 = arith.select %69, %73, %67 : vector<128x1xi1>, vector<128x1xi32>
    %c8_i32_25 = arith.constant 8 : i32
    %75 = vector.broadcast %c8_i32_25 : i32 to vector<128x1xi32>
    %76 = arith.muli %66, %75 : vector<128x1xi32>
    %77 = vector.broadcast %46 : vector<1x8xi32> to vector<128x8xi32>
    %78 = vector.broadcast %76 : vector<128x1xi32> to vector<128x8xi32>
    %79 = arith.subi %77, %78 : vector<128x8xi32>
    %c0_i32_26 = arith.constant 0 : i32
    %80 = vector.broadcast %c0_i32_26 : i32 to vector<128x8xi32>
    %81 = arith.cmpi sge, %79, %80 : vector<128x8xi32>
    %82 = vector.broadcast %74 : vector<128x1xi32> to vector<128x8xi32>
    %83 = arith.cmpi slt, %79, %82 : vector<128x8xi32>
    %84 = arith.andi %81, %83 : vector<128x8xi1>
    %85 = arith.extui %84 : vector<128x8xi1> to vector<128x8xi32>
    %86 = arith.sitofp %85 : vector<128x8xi32> to vector<128x8xf32>
    %87 = tpu.iota {dimensions = array<i32: 1>} : vector<1x128xi32>
    %88 = vector.broadcast %8 : vector<8x1xi32> to vector<8x8xi32>
    %89 = vector.broadcast %48 : vector<1x8xi32> to vector<8x8xi32>
    %90 = arith.cmpi eq, %88, %89 : vector<8x8xi32>
    %91 = vector.broadcast %65 : vector<1x8xi1> to vector<8x8xi1>
    %92 = arith.andi %90, %91 : vector<8x8xi1>
    "tpu.trace_start"() <{level = 10 : i32, message = "md,nd->mn"}> : () -> ()
    %cst = arith.constant dense<0.000000e+00> : vector<8x8xf32>
    %93 = tpu.matmul %2, %4, %cst {dimension_numbers = #tpu.dot_dimension_numbers<[1], [1], [0], [0], [0, 0, 1, 0], [], []>} : vector<8x128xbf16>, vector<8x128xbf16>, vector<8x8xf32> -> vector<8x8xf32>
    "tpu.trace_stop"() : () -> ()
    %cst_27 = arith.constant 6.250000e-02 : f32
    %94 = vector.broadcast %cst_27 : f32 to vector<8x8xf32>
    %95 = arith.mulf %94, %93 : vector<8x8xf32>
    %cst_28 = arith.constant -1.000000e+30 : f32
    %96 = vector.broadcast %cst_28 : f32 to vector<8x8xf32>
    %97 = arith.select %92, %95, %96 : vector<8x8xi1>, vector<8x8xf32>
    %cst_29 = arith.constant dense<0xFF800000> : vector<8xf32>
    %98 = vector.multi_reduction <maximumf>, %97, %cst_29 [1] : vector<8x8xf32> to vector<8xf32>
    %99 = vector.shape_cast %98 : vector<8xf32> to vector<8x1xf32>
    %100 = vector.broadcast %99 : vector<8x1xf32> to vector<8x8xf32>
    %101 = arith.subf %97, %100 : vector<8x8xf32>
    %102 = math.exp %101 : vector<8x8xf32>
    %cst_30 = arith.constant dense<0.000000e+00> : vector<8xf32>
    %103 = vector.multi_reduction <add>, %102, %cst_30 [1] : vector<8x8xf32> to vector<8xf32>
    %104 = vector.shape_cast %103 : vector<8xf32> to vector<8x1xf32>
    %105 = tpu.reciprocal %104 {approx = true} : vector<8x1xf32> -> vector<8x1xf32>
    %106 = vector.broadcast %105 : vector<8x1xf32> to vector<8x8xf32>
    %107 = arith.mulf %102, %106 : vector<8x8xf32>
    %108 = arith.truncf %107 : vector<8x8xf32> to vector<8x8xbf16>
    %cst_31 = arith.constant dense<0.000000e+00> : vector<8x128xf32>
    %109 = tpu.matmul %108, %4, %cst_31 {dimension_numbers = #tpu.dot_dimension_numbers<[1], [0], [0], [1], [0, 0, 1, 1], [], []>} : vector<8x8xbf16>, vector<8x128xbf16>, vector<8x128xf32> -> vector<8x128xf32>
    %c32_i32 = arith.constant 32 : i32
    %110 = vector.broadcast %c32_i32 : i32 to vector<1x128xi32>
    %111 = arith.cmpi eq, %87, %110 : vector<1x128xi32>
    %cst_32 = arith.constant 1.000000e+00 : f32
    %112 = vector.shape_cast %111 : vector<1x128xi1> to vector<1x128xi1>
    %113 = vector.broadcast %112 : vector<1x128xi1> to vector<8x128xi1>
    %114 = vector.broadcast %cst_32 : f32 to vector<8x128xf32>
    %115 = arith.select %113, %114, %109 : vector<8x128xi1>, vector<8x128xf32>
    %116 = arith.truncf %115 : vector<8x128xf32> to vector<8x128xbf16>
    %117 = vector.broadcast %8 : vector<8x1xi32> to vector<8x8xi32>
    %118 = vector.broadcast %7 : vector<1x8xi32> to vector<8x8xi32>
    %119 = arith.cmpi eq, %117, %118 : vector<8x8xi32>
    %120 = vector.broadcast %24 : vector<1x8xi1> to vector<8x8xi1>
    %121 = arith.andi %119, %120 : vector<8x8xi1>
    "tpu.trace_start"() <{level = 10 : i32, message = "md,nd->mn"}> : () -> ()
    %cst_33 = arith.constant dense<0.000000e+00> : vector<8x8xf32>
    %122 = tpu.matmul %116, %2, %cst_33 {dimension_numbers = #tpu.dot_dimension_numbers<[1], [1], [0], [0], [0, 0, 1, 0], [], []>} : vector<8x128xbf16>, vector<8x128xbf16>, vector<8x8xf32> -> vector<8x8xf32>
    "tpu.trace_stop"() : () -> ()
    %cst_34 = arith.constant 6.250000e-02 : f32
    %123 = vector.broadcast %cst_34 : f32 to vector<8x8xf32>
    %124 = arith.mulf %123, %122 : vector<8x8xf32>
    %cst_35 = arith.constant -1.000000e+30 : f32
    %125 = vector.broadcast %cst_35 : f32 to vector<8x8xf32>
    %126 = arith.select %121, %124, %125 : vector<8x8xi1>, vector<8x8xf32>
    %cst_36 = arith.constant dense<0xFF800000> : vector<8xf32>
    %127 = vector.multi_reduction <maximumf>, %126, %cst_36 [1] : vector<8x8xf32> to vector<8xf32>
    %128 = vector.shape_cast %127 : vector<8xf32> to vector<8x1xf32>
    %129 = vector.broadcast %128 : vector<8x1xf32> to vector<8x8xf32>
    %130 = arith.subf %126, %129 : vector<8x8xf32>
    %131 = math.exp %130 : vector<8x8xf32>
    %cst_37 = arith.constant dense<0.000000e+00> : vector<8xf32>
    %132 = vector.multi_reduction <add>, %131, %cst_37 [1] : vector<8x8xf32> to vector<8xf32>
    %133 = vector.shape_cast %132 : vector<8xf32> to vector<8x1xf32>
    %134 = tpu.reciprocal %133 {approx = true} : vector<8x1xf32> -> vector<8x1xf32>
    %135 = vector.broadcast %134 : vector<8x1xf32> to vector<8x8xf32>
    %136 = arith.mulf %131, %135 : vector<8x8xf32>
    %cst_38 = arith.constant dense<0.000000e+00> : vector<8x1xf32>
    %137 = tpu.matmul %136, %12, %cst_38 {dimension_numbers = #tpu.dot_dimension_numbers<[1], [0], [0], [1], [0, 0, 1, 1], [], []>} : vector<8x8xf32>, vector<8x1xf32>, vector<8x1xf32> -> vector<8x1xf32>
    %138 = arith.subf %137, %12 : vector<8x1xf32>
    %139 = arith.mulf %138, %138 : vector<8x1xf32>
    %cst_39 = arith.constant dense<0.000000e+00> : vector<128x1xf32>
    %140 = tpu.matmul %45, %139, %cst_39 {dimension_numbers = #tpu.dot_dimension_numbers<[1], [0], [0], [1], [0, 0, 1, 1], [], []>} : vector<128x8xf32>, vector<8x1xf32>, vector<128x1xf32> -> vector<128x1xf32>
    %141 = tpu.transpose %140, [1, 0] : vector<128x1xf32> -> vector<1x128xf32>
    %142 = vector.broadcast %49 : vector<8x1xi32> to vector<8x8xi32>
    %143 = vector.broadcast %7 : vector<1x8xi32> to vector<8x8xi32>
    %144 = arith.cmpi eq, %142, %143 : vector<8x8xi32>
    %145 = vector.broadcast %24 : vector<1x8xi1> to vector<8x8xi1>
    %146 = arith.andi %144, %145 : vector<8x8xi1>
    "tpu.trace_start"() <{level = 10 : i32, message = "md,nd->mn"}> : () -> ()
    %cst_40 = arith.constant dense<0.000000e+00> : vector<8x8xf32>
    %147 = tpu.matmul %4, %2, %cst_40 {dimension_numbers = #tpu.dot_dimension_numbers<[1], [1], [0], [0], [0, 0, 1, 0], [], []>} : vector<8x128xbf16>, vector<8x128xbf16>, vector<8x8xf32> -> vector<8x8xf32>
    "tpu.trace_stop"() : () -> ()
    %cst_41 = arith.constant 6.250000e-02 : f32
    %148 = vector.broadcast %cst_41 : f32 to vector<8x8xf32>
    %149 = arith.mulf %148, %147 : vector<8x8xf32>
    %cst_42 = arith.constant -1.000000e+30 : f32
    %150 = vector.broadcast %cst_42 : f32 to vector<8x8xf32>
    %151 = arith.select %146, %149, %150 : vector<8x8xi1>, vector<8x8xf32>
    %cst_43 = arith.constant dense<0xFF800000> : vector<8xf32>
    %152 = vector.multi_reduction <maximumf>, %151, %cst_43 [1] : vector<8x8xf32> to vector<8xf32>
    %153 = vector.shape_cast %152 : vector<8xf32> to vector<8x1xf32>
    %154 = vector.broadcast %153 : vector<8x1xf32> to vector<8x8xf32>
    %155 = arith.subf %151, %154 : vector<8x8xf32>
    %156 = math.exp %155 : vector<8x8xf32>
    %cst_44 = arith.constant dense<0.000000e+00> : vector<8xf32>
    %157 = vector.multi_reduction <add>, %156, %cst_44 [1] : vector<8x8xf32> to vector<8xf32>
    %158 = vector.shape_cast %157 : vector<8xf32> to vector<8x1xf32>
    %159 = tpu.reciprocal %158 {approx = true} : vector<8x1xf32> -> vector<8x1xf32>
    %160 = vector.broadcast %159 : vector<8x1xf32> to vector<8x8xf32>
    %161 = arith.mulf %156, %160 : vector<8x8xf32>
    %162 = arith.truncf %161 : vector<8x8xf32> to vector<8x8xbf16>
    %cst_45 = arith.constant dense<0.000000e+00> : vector<8x128xf32>
    %163 = tpu.matmul %162, %2, %cst_45 {dimension_numbers = #tpu.dot_dimension_numbers<[1], [0], [0], [1], [0, 0, 1, 1], [], []>} : vector<8x8xbf16>, vector<8x128xbf16>, vector<8x128xf32> -> vector<8x128xf32>
    %c33_i32 = arith.constant 33 : i32
    %164 = vector.broadcast %c33_i32 : i32 to vector<1x128xi32>
    %165 = arith.cmpi eq, %87, %164 : vector<1x128xi32>
    %cst_46 = arith.constant 1.000000e+00 : f32
    %166 = vector.shape_cast %165 : vector<1x128xi1> to vector<1x128xi1>
    %167 = vector.broadcast %166 : vector<1x128xi1> to vector<8x128xi1>
    %168 = vector.broadcast %cst_46 : f32 to vector<8x128xf32>
    %169 = arith.select %167, %168, %163 : vector<8x128xi1>, vector<8x128xf32>
    %170 = arith.truncf %169 : vector<8x128xf32> to vector<8x128xbf16>
    %171 = vector.broadcast %49 : vector<8x1xi32> to vector<8x8xi32>
    %172 = vector.broadcast %48 : vector<1x8xi32> to vector<8x8xi32>
    %173 = arith.cmpi eq, %171, %172 : vector<8x8xi32>
    %174 = vector.broadcast %65 : vector<1x8xi1> to vector<8x8xi1>
    %175 = arith.andi %173, %174 : vector<8x8xi1>
    "tpu.trace_start"() <{level = 10 : i32, message = "md,nd->mn"}> : () -> ()
    %cst_47 = arith.constant dense<0.000000e+00> : vector<8x8xf32>
    %176 = tpu.matmul %170, %4, %cst_47 {dimension_numbers = #tpu.dot_dimension_numbers<[1], [1], [0], [0], [0, 0, 1, 0], [], []>} : vector<8x128xbf16>, vector<8x128xbf16>, vector<8x8xf32> -> vector<8x8xf32>
    "tpu.trace_stop"() : () -> ()
    %cst_48 = arith.constant 6.250000e-02 : f32
    %177 = vector.broadcast %cst_48 : f32 to vector<8x8xf32>
    %178 = arith.mulf %177, %176 : vector<8x8xf32>
    %cst_49 = arith.constant -1.000000e+30 : f32
    %179 = vector.broadcast %cst_49 : f32 to vector<8x8xf32>
    %180 = arith.select %175, %178, %179 : vector<8x8xi1>, vector<8x8xf32>
    %cst_50 = arith.constant dense<0xFF800000> : vector<8xf32>
    %181 = vector.multi_reduction <maximumf>, %180, %cst_50 [1] : vector<8x8xf32> to vector<8xf32>
    %182 = vector.shape_cast %181 : vector<8xf32> to vector<8x1xf32>
    %183 = vector.broadcast %182 : vector<8x1xf32> to vector<8x8xf32>
    %184 = arith.subf %180, %183 : vector<8x8xf32>
    %185 = math.exp %184 : vector<8x8xf32>
    %cst_51 = arith.constant dense<0.000000e+00> : vector<8xf32>
    %186 = vector.multi_reduction <add>, %185, %cst_51 [1] : vector<8x8xf32> to vector<8xf32>
    %187 = vector.shape_cast %186 : vector<8xf32> to vector<8x1xf32>
    %188 = tpu.reciprocal %187 {approx = true} : vector<8x1xf32> -> vector<8x1xf32>
    %189 = vector.broadcast %188 : vector<8x1xf32> to vector<8x8xf32>
    %190 = arith.mulf %185, %189 : vector<8x8xf32>
    %cst_52 = arith.constant dense<0.000000e+00> : vector<8x1xf32>
    %191 = tpu.matmul %190, %53, %cst_52 {dimension_numbers = #tpu.dot_dimension_numbers<[1], [0], [0], [1], [0, 0, 1, 1], [], []>} : vector<8x8xf32>, vector<8x1xf32>, vector<8x1xf32> -> vector<8x1xf32>
    %192 = arith.subf %191, %53 : vector<8x1xf32>
    %193 = arith.mulf %192, %192 : vector<8x1xf32>
    %cst_53 = arith.constant dense<0.000000e+00> : vector<128x1xf32>
    %194 = tpu.matmul %86, %193, %cst_53 {dimension_numbers = #tpu.dot_dimension_numbers<[1], [0], [0], [1], [0, 0, 1, 1], [], []>} : vector<128x8xf32>, vector<8x1xf32>, vector<128x1xf32> -> vector<128x1xf32>
    %195 = tpu.transpose %194, [1, 0] : vector<128x1xf32> -> vector<1x128xf32>
    %196 = tpu.concatenate %141, %195 in 0 : vector<1x128xf32>, vector<1x128xf32> -> vector<2x128xf32>
    %197 = vector.shape_cast %196 : vector<2x128xf32> to vector<1x2x128xf32>
    %c0_54 = arith.constant 0 : index
    %c0_55 = arith.constant 0 : index
    %c0_56 = arith.constant 0 : index
    %198 = vector.load %arg5[%c0_54, %c0_55, %c0_56] : memref<1x2x128xf32, #tpu.memory_space<vmem>>, vector<1x2x128xf32>
    tpu.vector_store %arg5[%c0_54, %c0_55, %c0_56], %197 {strides = array<i32>} : memref<1x2x128xf32, #tpu.memory_space<vmem>>, vector<1x2x128xf32>,
    return
  }
  func.func @transform_0(%arg0: i32, %arg1: memref<2xi32, #tpu.memory_space<smem>>, %arg2: memref<2xi32, #tpu.memory_space<smem>>) -> (i32, i32, i32) {
    %c0_i32 = arith.constant 0 : i32
    %c0_i32_0 = arith.constant 0 : i32
    %c0_i32_1 = arith.constant 0 : i32
    return %arg0, %c0_i32, %c0_i32_0 : i32, i32, i32
  }
  func.func @transform_1(%arg0: i32, %arg1: memref<2xi32, #tpu.memory_space<smem>>, %arg2: memref<2xi32, #tpu.memory_space<smem>>) -> (i32, i32, i32) {
    %c0_i32 = arith.constant 0 : i32
    %c0_i32_0 = arith.constant 0 : i32
    %c0_i32_1 = arith.constant 0 : i32
    return %arg0, %c0_i32, %c0_i32_0 : i32, i32, i32
  }
  func.func @transform_2(%arg0: i32, %arg1: memref<2xi32, #tpu.memory_space<smem>>, %arg2: memref<2xi32, #tpu.memory_space<smem>>) -> (i32, i32, i32) {
    %c0_i32 = arith.constant 0 : i32
    %c0_i32_0 = arith.constant 0 : i32
    %c0_i32_1 = arith.constant 0 : i32
    return %arg0, %c0_i32, %c0_i32_0 : i32, i32, i32
  }
}

</mosaic_0001>

<llo_original>
// kernel: tpu_custom_call.1
$region0: #{tpu_custom_call.1}
  #allocation0 [shape = 'u32[]', space=smem, size = 0x4, offset = 0x4, fixed_abs, tag = 'smem constant byte address 0x4 - core index']
  #allocation1 [shape = 'u32[144,128]{1,0:T(1,128)}', space=vmem, size = 0x12000, scoped, tag = 'internal scratch']
  #allocation2 [shape = 's32[1]{0}', space=sflag, size = 0x4, scoped, tag = 'scoped memory for tpu_custom_call.1']
  #allocation3 [shape = 'u8[512]{0}', space=smem, size = 0x200, scoped, tag = 'prefetched SMEM operand 0']
  #allocation4 [shape = 'u8[512]{0}', space=smem, size = 0x200, scoped, tag = 'prefetched SMEM operand 1']
  %s0 = inlined_call_operand.hbm [shape: s32[2], index: 0, kind: input, shape index: {}]
  %s1 = inlined_call_operand.vmem [shape: s32[2], index: 1, kind: input, shape index: {}]
  %s2 = inlined_call_operand.hbm [shape: bf16[2,8,128], index: 2, kind: input, shape index: {}]
  %s3 = inlined_call_operand.vmem [shape: bf16[2,8,128], index: 3, kind: input, shape index: {}]
  %s4 = inlined_call_operand.hbm [shape: f32[2,2,128], index: 4, kind: output, shape index: {}]
  %s5 = sld [smem:[#allocation0]]
  $region45: #{tpu_custom_call.1} parent=0
    _
  %s7 = ssub.s32 1, %s5
  %s8 = scalar_select 0, %s7, %s5
  %10 = dma.hbm_to_smem %s0, 16, [#allocation3], [#allocation2]
  %s11 = sshll.u32 %s1, 4
  %s12 = int_to_ptr.vmem [resolvable:$true] %s11
  %14 = dma.vmem_to_smem %s12, 16, [#allocation4], [#allocation2]
  %15 = dma.done [#allocation2], 32
  %16 = sfence
  $region1: #{tpu_custom_call.1} parent=0
    #allocation5 [shape = 'u8[4096]{0}', space=vmem, size = 0x1000, scoped, tag = 'input window, operand 2']
    #allocation6 [shape = 's32[2]{0}', space=sflag, size = 0x8, scoped, tag = 'scoped memory for tpu_custom_call.1']
    #allocation7 [shape = 's32[2]{0}', space=sflag, size = 0x8, scoped, tag = 'scoped memory for tpu_custom_call.1']
    #allocation8 [shape = 'u8[2048]{0}', space=vmem, size = 0x800, scoped, tag = 'output window, operand 0']
    %17 = vsyncpa [#allocation6], 0
    %s18 = scalar_lea.sflag [#allocation6], 1
    %19 = vsyncpa %s18, 0
    %20 = vsyncpa [#allocation7], 0
    %s21 = scalar_lea.sflag [#allocation7], 1
    %22 = vsyncpa %s21, 0
    loop: start=0, step=1, limit=4
    $region2: #{tpu_custom_call.1} parent=1 // loop_pre_header
      _
    $region3: #{tpu_custom_call.1} parent=1 // loop_header
      %s24 = sphi 0, %s28
      %p25 = scmp.ge.s32.totalorder %s24, 4
      %s34 = sphi 0, %s36
      %s37 = sphi 0, %s34
      %s38 = sphi 0, %s37
      %s54 = sphi 0, %s38
      %s60 = sphi 0, %s62
      %s63 = sphi 0, %s60
      %s64 = sphi 0, %s63
      %s80 = sphi 0, %s64
      %s86 = sphi 0, %s88
      %s89 = sphi 0, %s86
      %s90 = sphi 0, %s89
      %s106 = sphi 0, %s90
    $region4: #{tpu_custom_call.1} parent=1 // loop_header_branch
      %27 = sbr.rel (%p25) target = $region8
    $region5: #{tpu_custom_call.1} parent=1 // loop_body
      %s29 = ssub.s32 %s24, 1
      %s30 = ssub.s32 %s24, 2
      %s31 = sadd.s32 %s24, 1
      %s32 = ssub.s32 %s24, %s31
      %p33 = scmp.eq.s32.totalorder %s32, 0
      %s35 = sadd.s32 %s34, 1
      %s36 = scalar_select %p33, %s34, %s35
      %p39 = pneg %p33
      %p40 = scmp.eq.s32.totalorder %s24, 1
      %p41 = por %p39, %p40
      %p42 = scmp.ne.s32.totalorder %s34, %s37
      %p43 = scmp.eq.s32.totalorder %s24, 0
      %p44 = por %p42, %p43
      %p45 = scmp.ne.s32.totalorder %s34, %s37
      %p46 = scmp.eq.s32.totalorder %s29, 1
      %p47 = por %p45, %p46
      %p48 = scmp.ne.s32.totalorder %s37, %s38
      %p49 = scmp.eq.s32.totalorder %s29, 0
      %p50 = por %p48, %p49
      %p51 = scmp.ne.s32.totalorder %s37, %s38
      %p52 = scmp.eq.s32.totalorder %s30, 1
      %p53 = por %p51, %p52
      %p55 = scmp.ne.s32.totalorder %s38, %s54
      %p56 = scmp.eq.s32.totalorder %s30, 0
      %p57 = por %p55, %p56
      %s58 = ssub.s32 %s24, %s31
      %p59 = scmp.eq.s32.totalorder %s58, 0
      %s61 = sadd.s32 %s60, 1
      %s62 = scalar_select %p59, %s60, %s61
      %p65 = pneg %p59
      %p66 = scmp.eq.s32.totalorder %s24, 1
      %p67 = por %p65, %p66
      %p68 = scmp.ne.s32.totalorder %s60, %s63
      %p69 = scmp.eq.s32.totalorder %s24, 0
      %p70 = por %p68, %p69
      %p71 = scmp.ne.s32.totalorder %s60, %s63
      %p72 = scmp.eq.s32.totalorder %s29, 1
      %p73 = por %p71, %p72
      %p74 = scmp.ne.s32.totalorder %s63, %s64
      %p75 = scmp.eq.s32.totalorder %s29, 0
      %p76 = por %p74, %p75
      %p77 = scmp.ne.s32.totalorder %s63, %s64
      %p78 = scmp.eq.s32.totalorder %s30, 1
      %p79 = por %p77, %p78
      %p81 = scmp.ne.s32.totalorder %s64, %s80
      %p82 = scmp.eq.s32.totalorder %s30, 0
      %p83 = por %p81, %p82
      %s84 = ssub.s32 %s24, %s31
      %p85 = scmp.eq.s32.totalorder %s84, 0
      %s87 = sadd.s32 %s86, 1
      %s88 = scalar_select %p85, %s86, %s87
      %p91 = pneg %p85
      %p92 = scmp.eq.s32.totalorder %s24, 1
      %p93 = por %p91, %p92
      %p94 = scmp.ne.s32.totalorder %s86, %s89
      %p95 = scmp.eq.s32.totalorder %s24, 0
      %p96 = por %p94, %p95
      %p97 = scmp.ne.s32.totalorder %s86, %s89
      %p98 = scmp.eq.s32.totalorder %s29, 1
      %p99 = por %p97, %p98
      %p100 = scmp.ne.s32.totalorder %s89, %s90
      %p101 = scmp.eq.s32.totalorder %s29, 0
      %p102 = por %p100, %p101
      %p103 = scmp.ne.s32.totalorder %s89, %s90
      %p104 = scmp.eq.s32.totalorder %s30, 1
      %p105 = por %p103, %p104
      %p107 = scmp.ne.s32.totalorder %s90, %s106
      %p108 = scmp.eq.s32.totalorder %s30, 0
      %p109 = por %p107, %p108
      %p110 = scmp.le.s32.totalorder 1, %s24
      %p111 = scmp.lt.s32.totalorder %s24, 3
      %p112 = pnand %p110, %p111
      %p113 = pneg %p112
      // Predicated region
      $region9: #{tpu_custom_call.1} parent=5 // pred_check
        _
      $region10: #{tpu_custom_call.1} parent=5 // pred_check_branch
        %115 = sbr.rel (%p112) target = $region12
      $region11: #{tpu_custom_call.1} parent=5 // pred_region
        %s116 = ssub.s32 %s24, 1
      $region12: #{tpu_custom_call.1} parent=5 // pred_fallthru
        _
      %p117 = scmp.lt.s32.totalorder %s24, 2
      // Predicated region
      $region13: #{tpu_custom_call.1} parent=5 // pred_check
        %p118 = pneg %p117
      $region14: #{tpu_custom_call.1} parent=5 // pred_check_branch
        %120 = sbr.rel (%p118) target = $region16
      $region15: #{tpu_custom_call.1} parent=5 // pred_region
        // Predicated region
        $region17: #{tpu_custom_call.1} parent=15 // pred_check
          %p121 = pneg %p44
        $region18: #{tpu_custom_call.1} parent=15 // pred_check_branch
          %123 = sbr.rel (%p121) target = $region20
        $region19: #{tpu_custom_call.1} parent=15 // pred_region
          %s124 = sand.u32 %s34, 1
          %s125 = scalar_lea.sflag [#allocation6], %s124
          %s126 = sand.u32 %s34, 1
          %s127 = smul.addr %s126, 4
          %s128 = scalar_lea.vmem [#allocation5], %s127
          %s130 = ssub.s32 64, 64
          %131 = vsyncadd %s125, %s130
          %s132 = smul.addr %s24, 64
          %s133 = scalar_lea.hbm %s2, %s132
          %s135 = sshll.u32 %s128, 4
          %s136 = int_to_ptr.vmem [resolvable:$true] %s135
          %138 = dma.hbm_to_vmem [thread:$0]  %s133, 64, %s136, %s125
        $region20: #{tpu_custom_call.1} parent=15 // pred_fallthru
          _
        // Predicated region
        $region21: #{tpu_custom_call.1} parent=15 // pred_check
          %p139 = pneg %p70
        $region22: #{tpu_custom_call.1} parent=15 // pred_check_branch
          %141 = sbr.rel (%p139) target = $region24
        $region23: #{tpu_custom_call.1} parent=15 // pred_region
          %p142 = scmp.lt.s32.totalorder %s24, 1
          %s143 = scalar_select %p142, %s24, 1
          %s144 = smul.addr %s143, 4
          %s145 = scalar_lea.vmem %s3, %s144
        $region24: #{tpu_custom_call.1} parent=15 // pred_fallthru
          _
      $region16: #{tpu_custom_call.1} parent=5 // pred_fallthru
        _
      %p146 = scmp.le.s32.totalorder 1, %s24
      %p147 = scmp.lt.s32.totalorder %s24, 3
      %p148 = pnand %p146, %p147
      %p149 = pneg %p148
      // Predicated region
      $region25: #{tpu_custom_call.1} parent=5 // pred_check
        _
      $region26: #{tpu_custom_call.1} parent=5 // pred_check_branch
        %151 = sbr.rel (%p148) target = $region28
      $region27: #{tpu_custom_call.1} parent=5 // pred_region
        %s152 = ssub.s32 %s24, 1
        %s153 = sand.u32 %s37, 1
        %s154 = scalar_lea.sflag [#allocation6], %s153
        %s155 = sand.u32 %s37, 1
        %s156 = smul.addr %s155, 4
        %s157 = scalar_lea.vmem [#allocation5], %s156
        // Predicated region
        $region29: #{tpu_custom_call.1} parent=27 // pred_check
          %p158 = pneg %p50
        $region30: #{tpu_custom_call.1} parent=27 // pred_check_branch
          %160 = sbr.rel (%p158) target = $region32
        $region31: #{tpu_custom_call.1} parent=27 // pred_region
          %161 = dma.done %s154, 64
        $region32: #{tpu_custom_call.1} parent=27 // pred_fallthru
          _
        %s162 = sand.u32 %s37, 1
        %s163 = scalar_lea.sflag [#allocation6], %s162
        %s164 = sand.u32 %s37, 1
        %s165 = smul.addr %s164, 4
        %s166 = scalar_lea.vmem [#allocation5], %s165
        %p167 = pneg %p50
        %p168 = pneg %p47
        %p169 = scmp.lt.s32.totalorder %s29, 1
        %s170 = scalar_select %p169, %s29, 1
        %s171 = smul.addr %s170, 4
        %s172 = scalar_lea.vmem %s3, %s171
        %p173 = pneg %p76
        %p174 = pneg %p73
        %p175 = pneg %p102
        %p176 = pneg %p99
        %s177 = sand.u32 %s89, 1
        %s178 = scalar_lea.sflag [#allocation7], %s177
        %s179 = sand.u32 %s89, 1
        %s180 = smul.addr %s179, 2
        %s181 = scalar_lea.vmem [#allocation8], %s180
        %p182 = scmp.lt.s32.totalorder %s29, 1
        %s183 = scalar_select %p182, %s29, 1
        %s184 = smul.addr %s183, 4
        %s185 = scalar_lea.vmem %s3, %s184
        %v187 = vld [vmem:[%s157] sm:$0xf]
        %v188 = vld [vmem:[%s185] sm:$0xf]
        %v189 = vlaneseq
        %v190 = vand.u32 %v189, 127
        %v191 = vlaneseq
        %v192 = vshrl.u32 %v191, 7
        %v193 = vcvt.s32.f32 %v192
        %s194 = sld [smem:[#allocation3 + %s29]]
        %v195 = vstv %s194
        %vm196 = vcmp.lt.s32.totalorder %v190, %v195
        %v197 = vadd.s32 %v192, 8
        %v198 = vadd.s32 %v192, 16
        %v199 = vadd.s32 %v192, 24
        %v200 = vadd.s32 %v192, 32
        %v201 = vadd.s32 %v192, 40
        %v202 = vadd.s32 %v192, 48
        %v203 = vadd.s32 %v192, 56
        %v204 = vadd.s32 %v192, 64
        %v205 = vadd.s32 %v192, 72
        %v206 = vadd.s32 %v192, 80
        %v207 = vadd.s32 %v192, 88
        %v208 = vadd.s32 %v192, 96
        %v209 = vadd.s32 %v192, 104
        %v210 = vadd.s32 %v192, 112
        %v211 = vadd.s32 %v192, 120
        %vm212 = vcmp.eq.s32.totalorder %v192, 0
        %vm213 = vcmp.eq.s32.totalorder %v197, 0
        %vm214 = vcmp.eq.s32.totalorder %v198, 0
        %vm215 = vcmp.eq.s32.totalorder %v199, 0
        %vm216 = vcmp.eq.s32.totalorder %v200, 0
        %vm217 = vcmp.eq.s32.totalorder %v201, 0
        %vm218 = vcmp.eq.s32.totalorder %v202, 0
        %vm219 = vcmp.eq.s32.totalorder %v203, 0
        %vm220 = vcmp.eq.s32.totalorder %v204, 0
        %vm221 = vcmp.eq.s32.totalorder %v205, 0
        %vm222 = vcmp.eq.s32.totalorder %v206, 0
        %vm223 = vcmp.eq.s32.totalorder %v207, 0
        %vm224 = vcmp.eq.s32.totalorder %v208, 0
        %vm225 = vcmp.eq.s32.totalorder %v209, 0
        %vm226 = vcmp.eq.s32.totalorder %v210, 0
        %vm227 = vcmp.eq.s32.totalorder %v211, 0
        %v228 = vsel %vm212, %v195, 0
        %v229 = vsel %vm213, %v195, 0
        %v230 = vsel %vm214, %v195, 0
        %v231 = vsel %vm215, %v195, 0
        %v232 = vsel %vm216, %v195, 0
        %v233 = vsel %vm217, %v195, 0
        %v234 = vsel %vm218, %v195, 0
        %v235 = vsel %vm219, %v195, 0
        %v236 = vsel %vm220, %v195, 0
        %v237 = vsel %vm221, %v195, 0
        %v238 = vsel %vm222, %v195, 0
        %v239 = vsel %vm223, %v195, 0
        %v240 = vsel %vm224, %v195, 0
        %v241 = vsel %vm225, %v195, 0
        %v242 = vsel %vm226, %v195, 0
        %v243 = vsel %vm227, %v195, 0
        %v244 = vmul.u32 %v192, 8
        %v245 = vmul.u32 %v197, 8
        %v246 = vmul.u32 %v198, 8
        %v247 = vmul.u32 %v199, 8
        %v248 = vmul.u32 %v200, 8
        %v249 = vmul.u32 %v201, 8
        %v250 = vmul.u32 %v202, 8
        %v251 = vmul.u32 %v203, 8
        %v252 = vmul.u32 %v204, 8
        %v253 = vmul.u32 %v205, 8
        %v254 = vmul.u32 %v206, 8
        %v255 = vmul.u32 %v207, 8
        %v256 = vmul.u32 %v208, 8
        %v257 = vmul.u32 %v209, 8
        %v258 = vmul.u32 %v210, 8
        %v259 = vmul.u32 %v211, 8
        %v260 = vsub.s32 %v190, %v244
        %v261 = vsub.s32 %v190, %v245
        %v262 = vsub.s32 %v190, %v246
        %v263 = vsub.s32 %v190, %v247
        %v264 = vsub.s32 %v190, %v248
        %v265 = vsub.s32 %v190, %v249
        %v266 = vsub.s32 %v190, %v250
        %v267 = vsub.s32 %v190, %v251
        %v268 = vsub.s32 %v190, %v252
        %v269 = vsub.s32 %v190, %v253
        %v270 = vsub.s32 %v190, %v254
        %v271 = vsub.s32 %v190, %v255
        %v272 = vsub.s32 %v190, %v256
        %v273 = vsub.s32 %v190, %v257
        %v274 = vsub.s32 %v190, %v258
        %v275 = vsub.s32 %v190, %v259
        %vm276 = vcmp.ge.s32.totalorder %v260, 0
        %vm277 = vcmp.ge.s32.totalorder %v261, 0
        %vm278 = vcmp.ge.s32.totalorder %v262, 0
        %vm279 = vcmp.ge.s32.totalorder %v263, 0
        %vm280 = vcmp.ge.s32.totalorder %v264, 0
        %vm281 = vcmp.ge.s32.totalorder %v265, 0
        %vm282 = vcmp.ge.s32.totalorder %v266, 0
        %vm283 = vcmp.ge.s32.totalorder %v267, 0
        %vm284 = vcmp.ge.s32.totalorder %v268, 0
        %vm285 = vcmp.ge.s32.totalorder %v269, 0
        %vm286 = vcmp.ge.s32.totalorder %v270, 0
        %vm287 = vcmp.ge.s32.totalorder %v271, 0
        %vm288 = vcmp.ge.s32.totalorder %v272, 0
        %vm289 = vcmp.ge.s32.totalorder %v273, 0
        %vm290 = vcmp.ge.s32.totalorder %v274, 0
        %vm291 = vcmp.ge.s32.totalorder %v275, 0
        %vm292 = vcmp.lt.s32.totalorder %v260, %v228
        %vm293 = vcmp.lt.s32.totalorder %v261, %v229
        %vm294 = vcmp.lt.s32.totalorder %v262, %v230
        %vm295 = vcmp.lt.s32.totalorder %v263, %v231
        %vm296 = vcmp.lt.s32.totalorder %v264, %v232
        %vm297 = vcmp.lt.s32.totalorder %v265, %v233
        %vm298 = vcmp.lt.s32.totalorder %v266, %v234
        %vm299 = vcmp.lt.s32.totalorder %v267, %v235
        %vm300 = vcmp.lt.s32.totalorder %v268, %v236
        %vm301 = vcmp.lt.s32.totalorder %v269, %v237
        %vm302 = vcmp.lt.s32.totalorder %v270, %v238
        %vm303 = vcmp.lt.s32.totalorder %v271, %v239
        %vm304 = vcmp.lt.s32.totalorder %v272, %v240
        %vm305 = vcmp.lt.s32.totalorder %v273, %v241
        %vm306 = vcmp.lt.s32.totalorder %v274, %v242
        %vm307 = vcmp.lt.s32.totalorder %v275, %v243
        %vm308 = vmand %vm276, %vm292
        %vm309 = vmand %vm277, %vm293
        %vm310 = vmand %vm278, %vm294
        %vm311 = vmand %vm279, %vm295
        %vm312 = vmand %vm280, %vm296
        %vm313 = vmand %vm281, %vm297
        %vm314 = vmand %vm282, %vm298
        %vm315 = vmand %vm283, %vm299
        %vm316 = vmand %vm284, %vm300
        %vm317 = vmand %vm285, %vm301
        %vm318 = vmand %vm286, %vm302
        %vm319 = vmand %vm287, %vm303
        %vm320 = vmand %vm288, %vm304
        %vm321 = vmand %vm289, %vm305
        %vm322 = vmand %vm290, %vm306
        %vm323 = vmand %vm291, %vm307
        %v324 = vsel %vm308, 1, 0
        %v325 = vsel %vm309, 1, 0
        %v326 = vsel %vm310, 1, 0
        %v327 = vsel %vm311, 1, 0
        %v328 = vsel %vm312, 1, 0
        %v329 = vsel %vm313, 1, 0
        %v330 = vsel %vm314, 1, 0
        %v331 = vsel %vm315, 1, 0
        %v332 = vsel %vm316, 1, 0
        %v333 = vsel %vm317, 1, 0
        %v334 = vsel %vm318, 1, 0
        %v335 = vsel %vm319, 1, 0
        %v336 = vsel %vm320, 1, 0
        %v337 = vsel %vm321, 1, 0
        %v338 = vsel %vm322, 1, 0
        %v339 = vsel %vm323, 1, 0
        %v340 = vcvt.s32.f32 %v324
        %v341 = vcvt.s32.f32 %v325
        %v342 = vcvt.s32.f32 %v326
        %v343 = vcvt.s32.f32 %v327
        %v344 = vcvt.s32.f32 %v328
        %v345 = vcvt.s32.f32 %v329
        %v346 = vcvt.s32.f32 %v330
        %v347 = vcvt.s32.f32 %v331
        %v348 = vcvt.s32.f32 %v332
        %v349 = vcvt.s32.f32 %v333
        %v350 = vcvt.s32.f32 %v334
        %v351 = vcvt.s32.f32 %v335
        %v352 = vcvt.s32.f32 %v336
        %v353 = vcvt.s32.f32 %v337
        %v354 = vcvt.s32.f32 %v338
        %v355 = vcvt.s32.f32 %v339
        %s356 = sld [smem:[#allocation4 + %s29]]
        %v357 = vstv %s356
        %vm358 = vcmp.lt.s32.totalorder %v190, %v357
        %v359 = vsel %vm212, %v357, 0
        %v360 = vsel %vm213, %v357, 0
        %v361 = vsel %vm214, %v357, 0
        %v362 = vsel %vm215, %v357, 0
        %v363 = vsel %vm216, %v357, 0
        %v364 = vsel %vm217, %v357, 0
        %v365 = vsel %vm218, %v357, 0
        %v366 = vsel %vm219, %v357, 0
        %v367 = vsel %vm220, %v357, 0
        %v368 = vsel %vm221, %v357, 0
        %v369 = vsel %vm222, %v357, 0
        %v370 = vsel %vm223, %v357, 0
        %v371 = vsel %vm224, %v357, 0
        %v372 = vsel %vm225, %v357, 0
        %v373 = vsel %vm226, %v357, 0
        %v374 = vsel %vm227, %v357, 0
        %vm375 = vcmp.lt.s32.totalorder %v260, %v359
        %vm376 = vcmp.lt.s32.totalorder %v261, %v360
        %vm377 = vcmp.lt.s32.totalorder %v262, %v361
        %vm378 = vcmp.lt.s32.totalorder %v263, %v362
        %vm379 = vcmp.lt.s32.totalorder %v264, %v363
        %vm380 = vcmp.lt.s32.totalorder %v265, %v364
        %vm381 = vcmp.lt.s32.totalorder %v266, %v365
        %vm382 = vcmp.lt.s32.totalorder %v267, %v366
        %vm383 = vcmp.lt.s32.totalorder %v268, %v367
        %vm384 = vcmp.lt.s32.totalorder %v269, %v368
        %vm385 = vcmp.lt.s32.totalorder %v270, %v369
        %vm386 = vcmp.lt.s32.totalorder %v271, %v370
        %vm387 = vcmp.lt.s32.totalorder %v272, %v371
        %vm388 = vcmp.lt.s32.totalorder %v273, %v372
        %vm389 = vcmp.lt.s32.totalorder %v274, %v373
        %vm390 = vcmp.lt.s32.totalorder %v275, %v374
        %vm391 = vmand %vm276, %vm375
        %vm392 = vmand %vm277, %vm376
        %vm393 = vmand %vm278, %vm377
        %vm394 = vmand %vm279, %vm378
        %vm395 = vmand %vm280, %vm379
        %vm396 = vmand %vm281, %vm380
        %vm397 = vmand %vm282, %vm381
        %vm398 = vmand %vm283, %vm382
        %vm399 = vmand %vm284, %vm383
        %vm400 = vmand %vm285, %vm384
        %vm401 = vmand %vm286, %vm385
        %vm402 = vmand %vm287, %vm386
        %vm403 = vmand %vm288, %vm387
        %vm404 = vmand %vm289, %vm388
        %vm405 = vmand %vm290, %vm389
        %vm406 = vmand %vm291, %vm390
        %v407 = vsel %vm391, 1, 0
        %v408 = vsel %vm392, 1, 0
        %v409 = vsel %vm393, 1, 0
        %v410 = vsel %vm394, 1, 0
        %v411 = vsel %vm395, 1, 0
        %v412 = vsel %vm396, 1, 0
        %v413 = vsel %vm397, 1, 0
        %v414 = vsel %vm398, 1, 0
        %v415 = vsel %vm399, 1, 0
        %v416 = vsel %vm400, 1, 0
        %v417 = vsel %vm401, 1, 0
        %v418 = vsel %vm402, 1, 0
        %v419 = vsel %vm403, 1, 0
        %v420 = vsel %vm404, 1, 0
        %v421 = vsel %vm405, 1, 0
        %v422 = vsel %vm406, 1, 0
        %v423 = vcvt.s32.f32 %v407
        %v424 = vcvt.s32.f32 %v408
        %v425 = vcvt.s32.f32 %v409
        %v426 = vcvt.s32.f32 %v410
        %v427 = vcvt.s32.f32 %v411
        %v428 = vcvt.s32.f32 %v412
        %v429 = vcvt.s32.f32 %v413
        %v430 = vcvt.s32.f32 %v414
        %v431 = vcvt.s32.f32 %v415
        %v432 = vcvt.s32.f32 %v416
        %v433 = vcvt.s32.f32 %v417
        %v434 = vcvt.s32.f32 %v418
        %v435 = vcvt.s32.f32 %v419
        %v436 = vcvt.s32.f32 %v420
        %v437 = vcvt.s32.f32 %v421
        %v438 = vcvt.s32.f32 %v422
        %v439 = vsel %vm358, 1, 0
        %vm440 = vcmp.eq.s32.totalorder %v439, 1
        %441 = vmatprep.subr.bf16.mxu0 0
        %442 = vmatpush1.bf16.xpose.msra.mxu0 %v188
        %443 = vmatprep.subr.bf16.mxu0 0
        %444 = vmatpush1.bf16.xpose.msra.mxu0 0
        %445 = vmatprep.subr.bf16.mxu0 0
        %446 = vmatpush1.bf16.xpose.msra.mxu0 0
        %447 = vmatprep.subr.bf16.mxu0 0
        %448 = vmatpush1.bf16.xpose.msra.mxu0 0
        %449 = vmatprep.subr.bf16.mxu0 0
        %450 = vmatpush1.bf16.xpose.msra.mxu0 0
        %451 = vmatprep.subr.bf16.mxu0 0
        %452 = vmatpush1.bf16.xpose.msra.mxu0 0
        %453 = vmatprep.subr.bf16.mxu0 0
        %454 = vmatpush1.bf16.xpose.msra.mxu0 0
        %455 = vmatprep.subr.bf16.mxu0 0
        %456 = vmatpush1.bf16.xpose.msra.mxu0 0
        %457 = vmatprep.subr.bf16.mxu0 0
        %458 = vmatpush1.bf16.xpose.msra.mxu0 0
        %459 = vmatprep.subr.bf16.mxu0 0
        %460 = vmatpush1.bf16.xpose.msra.mxu0 0
        %461 = vmatprep.subr.bf16.mxu0 0
        %462 = vmatpush1.bf16.xpose.msra.mxu0 0
        %463 = vmatprep.subr.bf16.mxu0 0
        %464 = vmatpush1.bf16.xpose.msra.mxu0 0
        %465 = vmatprep.subr.bf16.mxu0 0
        %466 = vmatpush1.bf16.xpose.msra.mxu0 0
        %467 = vmatprep.subr.bf16.mxu0 0
        %468 = vmatpush1.bf16.xpose.msra.mxu0 0
        %469 = vmatprep.subr.bf16.mxu0 0
        %470 = vmatpush1.bf16.xpose.msra.mxu0 0
        %471 = vmatprep.subr.bf16.mxu0 0
        %472 = vmatpush1.bf16.xpose.msra.mxu0 0
        %473 = vmatprep.mubr.bf16.mxu0 0
        %474 = vmatmul.mubr.bf16.gmra.mrb[0].mxu0 %v187
        %v475 = vpop.f32.mrb[0].mxu0
        %v476 = vadd.f32 0.0, %v475
        %v477 = vpop.f32.mrb[0].mxu0
        %v478 = vpop.f32.mrb[0].mxu0
        %v479 = vpop.f32.mrb[0].mxu0
        %480 = vdwg.mxu0
        %v481 = vmul.f32 %v476, 0.0625
        %v482 = vsel %vm440, %v481, -1e+30
        %vm483 = vcmask 64512
        %v484 = vsel %vm483, %v482, -inf
        %485 = vmax.xlane.f32.xlu0 %v484
        %v486 = vpop.xlane.xlu0 %485
        %v487 = vsub.f32 %v482, %v486
        %v488 = vmul.f32 %v487, 1.442695
        %v489 = vpow.pop %v488
        %v490 = vsel %vm483, %v489, 0.0
        %491 = vadd.xlane.f32.xlu0 %v490
        %v492 = vpop.xlane.xlu0 %491
        %v493 = vrcp.pop %v492
        %v494 = vmul.f32 %v489, %v493
        %v495 = vpack.c.bf16 %v494, %v494
        %v497 = vsel %vm483, %v495, 0
        %vm499 = vcmask 1043456
        %v501 = vsel %vm499, %v188, 0
        %503 = vmatprep.subr.bf16.mxu0 0
        %504 = vmatpush1.bf16.msra.mxu0 %v501
        %505 = vmatprep.subr.bf16.mxu0 0
        %506 = vmatpush1.bf16.msra.mxu0 0
        %507 = vmatprep.subr.bf16.mxu0 0
        %508 = vmatpush1.bf16.msra.mxu0 0
        %509 = vmatprep.subr.bf16.mxu0 0
        %510 = vmatpush1.bf16.msra.mxu0 0
        %511 = vmatprep.subr.bf16.mxu0 0
        %512 = vmatpush1.bf16.msra.mxu0 0
        %513 = vmatprep.subr.bf16.mxu0 0
        %514 = vmatpush1.bf16.msra.mxu0 0
        %515 = vmatprep.subr.bf16.mxu0 0
        %516 = vmatpush1.bf16.msra.mxu0 0
        %517 = vmatprep.subr.bf16.mxu0 0
        %518 = vmatpush1.bf16.msra.mxu0 0
        %519 = vmatprep.subr.bf16.mxu0 0
        %520 = vmatpush1.bf16.msra.mxu0 0
        %521 = vmatprep.subr.bf16.mxu0 0
        %522 = vmatpush1.bf16.msra.mxu0 0
        %523 = vmatprep.subr.bf16.mxu0 0
        %524 = vmatpush1.bf16.msra.mxu0 0
        %525 = vmatprep.subr.bf16.mxu0 0
        %526 = vmatpush1.bf16.msra.mxu0 0
        %527 = vmatprep.subr.bf16.mxu0 0
        %528 = vmatpush1.bf16.msra.mxu0 0
        %529 = vmatprep.subr.bf16.mxu0 0
        %530 = vmatpush1.bf16.msra.mxu0 0
        %531 = vmatprep.subr.bf16.mxu0 0
        %532 = vmatpush1.bf16.msra.mxu0 0
        %533 = vmatprep.subr.bf16.mxu0 0
        %534 = vmatpush1.bf16.msra.mxu0 0
        %535 = vmatprep.mubr.bf16.mxu0 0
        %536 = vmatmul.mubr.bf16.gmra.mrb[0].mxu0 %v497
        %v537 = vpop.f32.mrb[0].mxu0
        %v538 = vadd.f32 0.0, %v537
        %v539 = vpop.f32.mrb[0].mxu0
        %v540 = vpop.f32.mrb[0].mxu0
        %v541 = vpop.f32.mrb[0].mxu0
        %542 = vdwg.mxu0
        %vm543 = vcmp.eq.s32.totalorder %v190, 32
        %v544 = vsel %vm543, 1, 0
        %vm545 = vcmp.eq.s32.totalorder %v544, 1
        %v546 = vsel %vm545, 1.0, %v538
        %v547 = vpack.c.bf16 %v546, %v546
        %v548 = vsel %vm196, 1, 0
        %vm549 = vcmp.eq.s32.totalorder %v548, 1
        %550 = vmatprep.subr.bf16.mxu0 0
        %551 = vmatpush1.bf16.xpose.msra.mxu0 %v187
        %552 = vmatprep.subr.bf16.mxu0 0
        %553 = vmatpush1.bf16.xpose.msra.mxu0 0
        %554 = vmatprep.subr.bf16.mxu0 0
        %555 = vmatpush1.bf16.xpose.msra.mxu0 0
        %556 = vmatprep.subr.bf16.mxu0 0
        %557 = vmatpush1.bf16.xpose.msra.mxu0 0
        %558 = vmatprep.subr.bf16.mxu0 0
        %559 = vmatpush1.bf16.xpose.msra.mxu0 0
        %560 = vmatprep.subr.bf16.mxu0 0
        %561 = vmatpush1.bf16.xpose.msra.mxu0 0
        %562 = vmatprep.subr.bf16.mxu0 0
        %563 = vmatpush1.bf16.xpose.msra.mxu0 0
        %564 = vmatprep.subr.bf16.mxu0 0
        %565 = vmatpush1.bf16.xpose.msra.mxu0 0
        %566 = vmatprep.subr.bf16.mxu0 0
        %567 = vmatpush1.bf16.xpose.msra.mxu0 0
        %568 = vmatprep.subr.bf16.mxu0 0
        %569 = vmatpush1.bf16.xpose.msra.mxu0 0
        %570 = vmatprep.subr.bf16.mxu0 0
        %571 = vmatpush1.bf16.xpose.msra.mxu0 0
        %572 = vmatprep.subr.bf16.mxu0 0
        %573 = vmatpush1.bf16.xpose.msra.mxu0 0
        %574 = vmatprep.subr.bf16.mxu0 0
        %575 = vmatpush1.bf16.xpose.msra.mxu0 0
        %576 = vmatprep.subr.bf16.mxu0 0
        %577 = vmatpush1.bf16.xpose.msra.mxu0 0
        %578 = vmatprep.subr.bf16.mxu0 0
        %579 = vmatpush1.bf16.xpose.msra.mxu0 0
        %580 = vmatprep.subr.bf16.mxu0 0
        %581 = vmatpush1.bf16.xpose.msra.mxu0 0
        %582 = vmatprep.mubr.bf16.mxu0 0
        %583 = vmatmul.mubr.bf16.gmra.mrb[0].mxu0 %v547
        %v584 = vpop.f32.mrb[0].mxu0
        %v585 = vadd.f32 0.0, %v584
        %v586 = vpop.f32.mrb[0].mxu0
        %v587 = vpop.f32.mrb[0].mxu0
        %v588 = vpop.f32.mrb[0].mxu0
        %589 = vdwg.mxu0
        %v590 = vmul.f32 %v585, 0.0625
        %v591 = vsel %vm549, %v590, -1e+30
        %v592 = vsel %vm483, %v591, -inf
        %593 = vmax.xlane.f32.xlu0 %v592
        %v594 = vpop.xlane.xlu0 %593
        %v595 = vsub.f32 %v591, %v594
        %v596 = vmul.f32 %v595, 1.442695
        %v597 = vpow.pop %v596
        %v598 = vsel %vm483, %v597, 0.0
        %599 = vadd.xlane.f32.xlu0 %v598
        %v600 = vpop.xlane.xlu0 %599
        %v601 = vrcp.pop %v600
        %v602 = vmul.f32 %v597, %v601
        %v604 = vsel %vm483, %v602, 0
        %606 = vmatprep.subr.mxu0 0.0
        %607 = vmatpush1.msra.mxu0 %v193
        %608 = vmatprep.subr.mxu0 0.0
        %609 = vmatpush1.msra.mxu0 0.0
        %610 = vmatprep.subr.mxu0 0.0
        %611 = vmatpush1.msra.mxu0 0.0
        %612 = vmatprep.subr.mxu0 0.0
        %613 = vmatpush1.msra.mxu0 0.0
        %614 = vmatprep.subr.mxu0 0.0
        %615 = vmatpush1.msra.mxu0 0.0
        %616 = vmatprep.subr.mxu0 0.0
        %617 = vmatpush1.msra.mxu0 0.0
        %618 = vmatprep.subr.mxu0 0.0
        %619 = vmatpush1.msra.mxu0 0.0
        %620 = vmatprep.subr.mxu0 0.0
        %621 = vmatpush1.msra.mxu0 0.0
        %622 = vmatprep.subr.mxu0 0.0
        %623 = vmatpush1.msra.mxu0 0.0
        %624 = vmatprep.subr.mxu0 0.0
        %625 = vmatpush1.msra.mxu0 0.0
        %626 = vmatprep.subr.mxu0 0.0
        %627 = vmatpush1.msra.mxu0 0.0
        %628 = vmatprep.subr.mxu0 0.0
        %629 = vmatpush1.msra.mxu0 0.0
        %630 = vmatprep.subr.mxu0 0.0
        %631 = vmatpush1.msra.mxu0 0.0
        %632 = vmatprep.subr.mxu0 0.0
        %633 = vmatpush1.msra.mxu0 0.0
        %634 = vmatprep.subr.mxu0 0.0
        %635 = vmatpush1.msra.mxu0 0.0
        %636 = vmatprep.subr.mxu0 0.0
        %637 = vmatpush1.msra.mxu0 0.0
        %638 = vmatprep.subr.mxu0 0.0
        %639 = vmatpush1.msra.mxu0 0.0
        %640 = vmatprep.subr.mxu0 0.0
        %641 = vmatpush1.msra.mxu0 0.0
        %642 = vmatprep.subr.mxu0 0.0
        %643 = vmatpush1.msra.mxu0 0.0
        %644 = vmatprep.subr.mxu0 0.0
        %645 = vmatpush1.msra.mxu0 0.0
        %646 = vmatprep.subr.mxu0 0.0
        %647 = vmatpush1.msra.mxu0 0.0
        %648 = vmatprep.subr.mxu0 0.0
        %649 = vmatpush1.msra.mxu0 0.0
        %650 = vmatprep.subr.mxu0 0.0
        %651 = vmatpush1.msra.mxu0 0.0
        %652 = vmatprep.subr.mxu0 0.0
        %653 = vmatpush1.msra.mxu0 0.0
        %654 = vmatprep.subr.mxu0 0.0
        %655 = vmatpush1.msra.mxu0 0.0
        %656 = vmatprep.subr.mxu0 0.0
        %657 = vmatpush1.msra.mxu0 0.0
        %658 = vmatprep.subr.mxu0 0.0
        %659 = vmatpush1.msra.mxu0 0.0
        %660 = vmatprep.subr.mxu0 0.0
        %661 = vmatpush1.msra.mxu0 0.0
        %662 = vmatprep.subr.mxu0 0.0
        %663 = vmatpush1.msra.mxu0 0.0
        %664 = vmatprep.subr.mxu0 0.0
        %665 = vmatpush1.msra.mxu0 0.0
        %666 = vmatprep.subr.mxu0 0.0
        %667 = vmatpush1.msra.mxu0 0.0
        %668 = vmatprep.subr.mxu0 0.0
        %669 = vmatpush1.msra.mxu0 0.0
        %670 = vmatprep.mubr.f32.mxu0 0.0
        %671 = vmatmul.mubr.f32.gmra.mrb[0].mxu0 %v604
        %v672 = vpop.f32.mrb[0].mxu0
        %v673 = vadd.f32 0.0, %v672
        %v674 = vpop.f32.mrb[0].mxu0
        %675 = vdwg.mxu0
        %v676 = vsub.f32 %v673, %v193
        %v677 = vmul.f32 %v676, %v676
        %v679 = vsel %vm483, %v340, 0
        %v682 = vsel %vm483, %v341, 0
        %v685 = vsel %vm483, %v342, 0
        %v688 = vsel %vm483, %v343, 0
        %v691 = vsel %vm483, %v344, 0
        %v694 = vsel %vm483, %v345, 0
        %v697 = vsel %vm483, %v346, 0
        %v700 = vsel %vm483, %v347, 0
        %v703 = vsel %vm483, %v348, 0
        %v706 = vsel %vm483, %v349, 0
        %v709 = vsel %vm483, %v350, 0
        %v712 = vsel %vm483, %v351, 0
        %v715 = vsel %vm483, %v352, 0
        %v718 = vsel %vm483, %v353, 0
        %v721 = vsel %vm483, %v354, 0
        %v724 = vsel %vm483, %v355, 0
        %726 = vmatprep.subr.mxu0 0.0
        %727 = vmatpush1.msra.mxu0 %v677
        %728 = vmatprep.subr.mxu0 0.0
        %729 = vmatpush1.msra.mxu0 0.0
        %730 = vmatprep.subr.mxu0 0.0
        %731 = vmatpush1.msra.mxu0 0.0
        %732 = vmatprep.subr.mxu0 0.0
        %733 = vmatpush1.msra.mxu0 0.0
        %734 = vmatprep.subr.mxu0 0.0
        %735 = vmatpush1.msra.mxu0 0.0
        %736 = vmatprep.subr.mxu0 0.0
        %737 = vmatpush1.msra.mxu0 0.0
        %738 = vmatprep.subr.mxu0 0.0
        %739 = vmatpush1.msra.mxu0 0.0
        %740 = vmatprep.subr.mxu0 0.0
        %741 = vmatpush1.msra.mxu0 0.0
        %742 = vmatprep.subr.mxu0 0.0
        %743 = vmatpush1.msra.mxu0 0.0
        %744 = vmatprep.subr.mxu0 0.0
        %745 = vmatpush1.msra.mxu0 0.0
        %746 = vmatprep.subr.mxu0 0.0
        %747 = vmatpush1.msra.mxu0 0.0
        %748 = vmatprep.subr.mxu0 0.0
        %749 = vmatpush1.msra.mxu0 0.0
        %750 = vmatprep.subr.mxu0 0.0
        %751 = vmatpush1.msra.mxu0 0.0
        %752 = vmatprep.subr.mxu0 0.0
        %753 = vmatpush1.msra.mxu0 0.0
        %754 = vmatprep.subr.mxu0 0.0
        %755 = vmatpush1.msra.mxu0 0.0
        %756 = vmatprep.subr.mxu0 0.0
        %757 = vmatpush1.msra.mxu0 0.0
        %758 = vmatprep.subr.mxu0 0.0
        %759 = vmatpush1.msra.mxu0 0.0
        %760 = vmatprep.subr.mxu0 0.0
        %761 = vmatpush1.msra.mxu0 0.0
        %762 = vmatprep.subr.mxu0 0.0
        %763 = vmatpush1.msra.mxu0 0.0
        %764 = vmatprep.subr.mxu0 0.0
        %765 = vmatpush1.msra.mxu0 0.0
        %766 = vmatprep.subr.mxu0 0.0
        %767 = vmatpush1.msra.mxu0 0.0
        %768 = vmatprep.subr.mxu0 0.0
        %769 = vmatpush1.msra.mxu0 0.0
        %770 = vmatprep.subr.mxu0 0.0
        %771 = vmatpush1.msra.mxu0 0.0
        %772 = vmatprep.subr.mxu0 0.0
        %773 = vmatpush1.msra.mxu0 0.0
        %774 = vmatprep.subr.mxu0 0.0
        %775 = vmatpush1.msra.mxu0 0.0
        %776 = vmatprep.subr.mxu0 0.0
        %777 = vmatpush1.msra.mxu0 0.0
        %778 = vmatprep.subr.mxu0 0.0
        %779 = vmatpush1.msra.mxu0 0.0
        %780 = vmatprep.subr.mxu0 0.0
        %781 = vmatpush1.msra.mxu0 0.0
        %782 = vmatprep.subr.mxu0 0.0
        %783 = vmatpush1.msra.mxu0 0.0
        %784 = vmatprep.subr.mxu0 0.0
        %785 = vmatpush1.msra.mxu0 0.0
        %786 = vmatprep.subr.mxu0 0.0
        %787 = vmatpush1.msra.mxu0 0.0
        %788 = vmatprep.subr.mxu0 0.0
        %789 = vmatpush1.msra.mxu0 0.0
        %790 = vmatprep.mubr.f32.mxu0 0.0
        %791 = vmatmul.mubr.f32.gmra.mrb[0].mxu0 %v679
        %v792 = vpop.f32.mrb[0].mxu0
        %v793 = vadd.f32 0.0, %v792
        %v794 = vpop.f32.mrb[0].mxu0
        %795 = vmatprep.mubr.f32.mxu0 0.0
        %796 = vmatmul.mubr.f32.gmra.mrb[0].mxu0 %v682
        %v797 = vpop.f32.mrb[0].mxu0
        %v798 = vadd.f32 0.0, %v797
        %v799 = vpop.f32.mrb[0].mxu0
        %800 = vmatprep.mubr.f32.mxu0 0.0
        %801 = vmatmul.mubr.f32.gmra.mrb[0].mxu0 %v685
        %v802 = vpop.f32.mrb[0].mxu0
        %v803 = vadd.f32 0.0, %v802
        %v804 = vpop.f32.mrb[0].mxu0
        %805 = vmatprep.mubr.f32.mxu0 0.0
        %806 = vmatmul.mubr.f32.gmra.mrb[0].mxu0 %v688
        %v807 = vpop.f32.mrb[0].mxu0
        %v808 = vadd.f32 0.0, %v807
        %v809 = vpop.f32.mrb[0].mxu0
        %810 = vmatprep.mubr.f32.mxu0 0.0
        %811 = vmatmul.mubr.f32.gmra.mrb[0].mxu0 %v691
        %v812 = vpop.f32.mrb[0].mxu0
        %v813 = vadd.f32 0.0, %v812
        %v814 = vpop.f32.mrb[0].mxu0
        %815 = vmatprep.mubr.f32.mxu0 0.0
        %816 = vmatmul.mubr.f32.gmra.mrb[0].mxu0 %v694
        %v817 = vpop.f32.mrb[0].mxu0
        %v818 = vadd.f32 0.0, %v817
        %v819 = vpop.f32.mrb[0].mxu0
        %820 = vmatprep.mubr.f32.mxu0 0.0
        %821 = vmatmul.mubr.f32.gmra.mrb[0].mxu0 %v697
        %v822 = vpop.f32.mrb[0].mxu0
        %v823 = vadd.f32 0.0, %v822
        %v824 = vpop.f32.mrb[0].mxu0
        %825 = vmatprep.mubr.f32.mxu0 0.0
        %826 = vmatmul.mubr.f32.gmra.mrb[0].mxu0 %v700
        %v827 = vpop.f32.mrb[0].mxu0
        %v828 = vadd.f32 0.0, %v827
        %v829 = vpop.f32.mrb[0].mxu0
        %830 = vmatprep.mubr.f32.mxu0 0.0
        %831 = vmatmul.mubr.f32.gmra.mrb[0].mxu0 %v703
        %v832 = vpop.f32.mrb[0].mxu0
        %v833 = vadd.f32 0.0, %v832
        %v834 = vpop.f32.mrb[0].mxu0
        %835 = vmatprep.mubr.f32.mxu0 0.0
        %836 = vmatmul.mubr.f32.gmra.mrb[0].mxu0 %v706
        %v837 = vpop.f32.mrb[0].mxu0
        %v838 = vadd.f32 0.0, %v837
        %v839 = vpop.f32.mrb[0].mxu0
        %840 = vmatprep.mubr.f32.mxu0 0.0
        %841 = vmatmul.mubr.f32.gmra.mrb[0].mxu0 %v709
        %v842 = vpop.f32.mrb[0].mxu0
        %v843 = vadd.f32 0.0, %v842
        %v844 = vpop.f32.mrb[0].mxu0
        %845 = vmatprep.mubr.f32.mxu0 0.0
        %846 = vmatmul.mubr.f32.gmra.mrb[0].mxu0 %v712
        %v847 = vpop.f32.mrb[0].mxu0
        %v848 = vadd.f32 0.0, %v847
        %v849 = vpop.f32.mrb[0].mxu0
        %850 = vmatprep.mubr.f32.mxu0 0.0
        %851 = vmatmul.mubr.f32.gmra.mrb[0].mxu0 %v715
        %v852 = vpop.f32.mrb[0].mxu0
        %v853 = vadd.f32 0.0, %v852
        %v854 = vpop.f32.mrb[0].mxu0
        %855 = vmatprep.mubr.f32.mxu0 0.0
        %856 = vmatmul.mubr.f32.gmra.mrb[0].mxu0 %v718
        %v857 = vpop.f32.mrb[0].mxu0
        %v858 = vadd.f32 0.0, %v857
        %v859 = vpop.f32.mrb[0].mxu0
        %860 = vmatprep.mubr.f32.mxu0 0.0
        %861 = vmatmul.mubr.f32.gmra.mrb[0].mxu0 %v721
        %v862 = vpop.f32.mrb[0].mxu0
        %v863 = vadd.f32 0.0, %v862
        %v864 = vpop.f32.mrb[0].mxu0
        %865 = vmatprep.mubr.f32.mxu0 0.0
        %866 = vmatmul.mubr.f32.gmra.mrb[0].mxu0 %v724
        %v867 = vpop.f32.mrb[0].mxu0
        %v868 = vadd.f32 0.0, %v867
        %v869 = vpop.f32.mrb[0].mxu0
        %870 = vdwg.mxu0
        %871 = vxpose.xlu0.b32.start [1/16] %v793, 128
        %872 = vxpose.xlu0.b32.cont [2/16] %v798, 128
        %873 = vxpose.xlu0.b32.cont [3/16] %v803, 128
        %874 = vxpose.xlu0.b32.cont [4/16] %v808, 128
        %875 = vxpose.xlu0.b32.cont [5/16] %v813, 128
        %876 = vxpose.xlu0.b32.cont [6/16] %v818, 128
        %877 = vxpose.xlu0.b32.cont [7/16] %v823, 128
        %878 = vxpose.xlu0.b32.cont [8/16] %v828, 128
        %879 = vxpose.xlu0.b32.cont [9/16] %v833, 128
        %880 = vxpose.xlu0.b32.cont [10/16] %v838, 128
        %881 = vxpose.xlu0.b32.cont [11/16] %v843, 128
        %882 = vxpose.xlu0.b32.cont [12/16] %v848, 128
        %883 = vxpose.xlu0.b32.cont [13/16] %v853, 128
        %884 = vxpose.xlu0.b32.cont [14/16] %v858, 128
        %885 = vxpose.xlu0.b32.cont [15/16] %v863, 128
        %886 = vxpose.xlu0.b32.end [16/16] %v868, 128
        %v887 = vpop.trf.xlu0
        %v888 = vpop.trf.xlu0
        %v889 = vpop.trf.xlu0
        %v890 = vpop.trf.xlu0
        %v891 = vpop.trf.xlu0
        %v892 = vpop.trf.xlu0
        %v893 = vpop.trf.xlu0
        %v894 = vpop.trf.xlu0
        %v895 = vpop.trf.xlu0
        %v896 = vpop.trf.xlu0
        %v897 = vpop.trf.xlu0
        %v898 = vpop.trf.xlu0
        %v899 = vpop.trf.xlu0
        %v900 = vpop.trf.xlu0
        %v901 = vpop.trf.xlu0
        %v902 = vpop.trf.xlu0
        %903 = vmatprep.subr.bf16.mxu0 0
        %904 = vmatpush1.bf16.xpose.msra.mxu0 %v187
        %905 = vmatprep.subr.bf16.mxu0 0
        %906 = vmatpush1.bf16.xpose.msra.mxu0 0
        %907 = vmatprep.subr.bf16.mxu0 0
        %908 = vmatpush1.bf16.xpose.msra.mxu0 0
        %909 = vmatprep.subr.bf16.mxu0 0
        %910 = vmatpush1.bf16.xpose.msra.mxu0 0
        %911 = vmatprep.subr.bf16.mxu0 0
        %912 = vmatpush1.bf16.xpose.msra.mxu0 0
        %913 = vmatprep.subr.bf16.mxu0 0
        %914 = vmatpush1.bf16.xpose.msra.mxu0 0
        %915 = vmatprep.subr.bf16.mxu0 0
        %916 = vmatpush1.bf16.xpose.msra.mxu0 0
        %917 = vmatprep.subr.bf16.mxu0 0
        %918 = vmatpush1.bf16.xpose.msra.mxu0 0
        %919 = vmatprep.subr.bf16.mxu0 0
        %920 = vmatpush1.bf16.xpose.msra.mxu0 0
        %921 = vmatprep.subr.bf16.mxu0 0
        %922 = vmatpush1.bf16.xpose.msra.mxu0 0
        %923 = vmatprep.subr.bf16.mxu0 0
        %924 = vmatpush1.bf16.xpose.msra.mxu0 0
        %925 = vmatprep.subr.bf16.mxu0 0
        %926 = vmatpush1.bf16.xpose.msra.mxu0 0
        %927 = vmatprep.subr.bf16.mxu0 0
        %928 = vmatpush1.bf16.xpose.msra.mxu0 0
        %929 = vmatprep.subr.bf16.mxu0 0
        %930 = vmatpush1.bf16.xpose.msra.mxu0 0
        %931 = vmatprep.subr.bf16.mxu0 0
        %932 = vmatpush1.bf16.xpose.msra.mxu0 0
        %933 = vmatprep.subr.bf16.mxu0 0
        %934 = vmatpush1.bf16.xpose.msra.mxu0 0
        %935 = vmatprep.mubr.bf16.mxu0 0
        %936 = vmatmul.mubr.bf16.gmra.mrb[0].mxu0 %v188
        %v937 = vpop.f32.mrb[0].mxu0
        %v938 = vadd.f32 0.0, %v937
        %v939 = vpop.f32.mrb[0].mxu0
        %v940 = vpop.f32.mrb[0].mxu0
        %v941 = vpop.f32.mrb[0].mxu0
        %942 = vdwg.mxu0
        %v943 = vmul.f32 %v938, 0.0625
        %v944 = vsel %vm549, %v943, -1e+30
        %v945 = vsel %vm483, %v944, -inf
        %946 = vmax.xlane.f32.xlu0 %v945
        %v947 = vpop.xlane.xlu0 %946
        %v948 = vsub.f32 %v944, %v947
        %v949 = vmul.f32 %v948, 1.442695
        %v950 = vpow.pop %v949
        %v951 = vsel %vm483, %v950, 0.0
        %952 = vadd.xlane.f32.xlu0 %v951
        %v953 = vpop.xlane.xlu0 %952
        %v954 = vrcp.pop %v953
        %v955 = vmul.f32 %v950, %v954
        %v956 = vpack.c.bf16 %v955, %v955
        %v958 = vsel %vm483, %v956, 0
        %v961 = vsel %vm499, %v187, 0
        %963 = vmatprep.subr.bf16.mxu0 0
        %964 = vmatpush1.bf16.msra.mxu0 %v961
        %965 = vmatprep.subr.bf16.mxu0 0
        %966 = vmatpush1.bf16.msra.mxu0 0
        %967 = vmatprep.subr.bf16.mxu0 0
        %968 = vmatpush1.bf16.msra.mxu0 0
        %969 = vmatprep.subr.bf16.mxu0 0
        %970 = vmatpush1.bf16.msra.mxu0 0
        %971 = vmatprep.subr.bf16.mxu0 0
        %972 = vmatpush1.bf16.msra.mxu0 0
        %973 = vmatprep.subr.bf16.mxu0 0
        %974 = vmatpush1.bf16.msra.mxu0 0
        %975 = vmatprep.subr.bf16.mxu0 0
        %976 = vmatpush1.bf16.msra.mxu0 0
        %977 = vmatprep.subr.bf16.mxu0 0
        %978 = vmatpush1.bf16.msra.mxu0 0
        %979 = vmatprep.subr.bf16.mxu0 0
        %980 = vmatpush1.bf16.msra.mxu0 0
        %981 = vmatprep.subr.bf16.mxu0 0
        %982 = vmatpush1.bf16.msra.mxu0 0
        %983 = vmatprep.subr.bf16.mxu0 0
        %984 = vmatpush1.bf16.msra.mxu0 0
        %985 = vmatprep.subr.bf16.mxu0 0
        %986 = vmatpush1.bf16.msra.mxu0 0
        %987 = vmatprep.subr.bf16.mxu0 0
        %988 = vmatpush1.bf16.msra.mxu0 0
        %989 = vmatprep.subr.bf16.mxu0 0
        %990 = vmatpush1.bf16.msra.mxu0 0
        %991 = vmatprep.subr.bf16.mxu0 0
        %992 = vmatpush1.bf16.msra.mxu0 0
        %993 = vmatprep.subr.bf16.mxu0 0
        %994 = vmatpush1.bf16.msra.mxu0 0
        %995 = vmatprep.mubr.bf16.mxu0 0
        %996 = vmatmul.mubr.bf16.gmra.mrb[0].mxu0 %v958
        %v997 = vpop.f32.mrb[0].mxu0
        %v998 = vadd.f32 0.0, %v997
        %v999 = vpop.f32.mrb[0].mxu0
        %v1000 = vpop.f32.mrb[0].mxu0
        %v1001 = vpop.f32.mrb[0].mxu0
        %1002 = vdwg.mxu0
        %vm1003 = vcmp.eq.s32.totalorder %v190, 33
        %v1004 = vsel %vm1003, 1, 0
        %vm1005 = vcmp.eq.s32.totalorder %v1004, 1
        %v1006 = vsel %vm1005, 1.0, %v998
        %v1007 = vpack.c.bf16 %v1006, %v1006
        %1008 = vmatprep.subr.bf16.mxu0 0
        %1009 = vmatpush1.bf16.xpose.msra.mxu0 %v188
        %1010 = vmatprep.subr.bf16.mxu0 0
        %1011 = vmatpush1.bf16.xpose.msra.mxu0 0
        %1012 = vmatprep.subr.bf16.mxu0 0
        %1013 = vmatpush1.bf16.xpose.msra.mxu0 0
        %1014 = vmatprep.subr.bf16.mxu0 0
        %1015 = vmatpush1.bf16.xpose.msra.mxu0 0
        %1016 = vmatprep.subr.bf16.mxu0 0
        %1017 = vmatpush1.bf16.xpose.msra.mxu0 0
        %1018 = vmatprep.subr.bf16.mxu0 0
        %1019 = vmatpush1.bf16.xpose.msra.mxu0 0
        %1020 = vmatprep.subr.bf16.mxu0 0
        %1021 = vmatpush1.bf16.xpose.msra.mxu0 0
        %1022 = vmatprep.subr.bf16.mxu0 0
        %1023 = vmatpush1.bf16.xpose.msra.mxu0 0
        %1024 = vmatprep.subr.bf16.mxu0 0
        %1025 = vmatpush1.bf16.xpose.msra.mxu0 0
        %1026 = vmatprep.subr.bf16.mxu0 0
        %1027 = vmatpush1.bf16.xpose.msra.mxu0 0
        %1028 = vmatprep.subr.bf16.mxu0 0
        %1029 = vmatpush1.bf16.xpose.msra.mxu0 0
        %1030 = vmatprep.subr.bf16.mxu0 0
        %1031 = vmatpush1.bf16.xpose.msra.mxu0 0
        %1032 = vmatprep.subr.bf16.mxu0 0
        %1033 = vmatpush1.bf16.xpose.msra.mxu0 0
        %1034 = vmatprep.subr.bf16.mxu0 0
        %1035 = vmatpush1.bf16.xpose.msra.mxu0 0
        %1036 = vmatprep.subr.bf16.mxu0 0
        %1037 = vmatpush1.bf16.xpose.msra.mxu0 0
        %1038 = vmatprep.subr.bf16.mxu0 0
        %1039 = vmatpush1.bf16.xpose.msra.mxu0 0
        %1040 = vmatprep.mubr.bf16.mxu0 0
        %1041 = vmatmul.mubr.bf16.gmra.mrb[0].mxu0 %v1007
        %v1042 = vpop.f32.mrb[0].mxu0
        %v1043 = vadd.f32 0.0, %v1042
        %v1044 = vpop.f32.mrb[0].mxu0
        %v1045 = vpop.f32.mrb[0].mxu0
        %v1046 = vpop.f32.mrb[0].mxu0
        %1047 = vdwg.mxu0
        %v1048 = vmul.f32 %v1043, 0.0625
        %v1049 = vsel %vm440, %v1048, -1e+30
        %v1050 = vsel %vm483, %v1049, -inf
        %1051 = vmax.xlane.f32.xlu0 %v1050
        %v1052 = vpop.xlane.xlu0 %1051
        %v1053 = vsub.f32 %v1049, %v1052
        %v1054 = vmul.f32 %v1053, 1.442695
        %v1055 = vpow.pop %v1054
        %v1056 = vsel %vm483, %v1055, 0.0
        %1057 = vadd.xlane.f32.xlu0 %v1056
        %v1058 = vpop.xlane.xlu0 %1057
        %v1059 = vrcp.pop %v1058
        %v1060 = vmul.f32 %v1055, %v1059
        %v1062 = vsel %vm483, %v1060, 0
        %1064 = vmatprep.subr.mxu0 0.0
        %1065 = vmatpush1.msra.mxu0 %v193
        %1066 = vmatprep.subr.mxu0 0.0
        %1067 = vmatpush1.msra.mxu0 0.0
        %1068 = vmatprep.subr.mxu0 0.0
        %1069 = vmatpush1.msra.mxu0 0.0
        %1070 = vmatprep.subr.mxu0 0.0
        %1071 = vmatpush1.msra.mxu0 0.0
        %1072 = vmatprep.subr.mxu0 0.0
        %1073 = vmatpush1.msra.mxu0 0.0
        %1074 = vmatprep.subr.mxu0 0.0
        %1075 = vmatpush1.msra.mxu0 0.0
        %1076 = vmatprep.subr.mxu0 0.0
        %1077 = vmatpush1.msra.mxu0 0.0
        %1078 = vmatprep.subr.mxu0 0.0
        %1079 = vmatpush1.msra.mxu0 0.0
        %1080 = vmatprep.subr.mxu0 0.0
        %1081 = vmatpush1.msra.mxu0 0.0
        %1082 = vmatprep.subr.mxu0 0.0
        %1083 = vmatpush1.msra.mxu0 0.0
        %1084 = vmatprep.subr.mxu0 0.0
        %1085 = vmatpush1.msra.mxu0 0.0
        %1086 = vmatprep.subr.mxu0 0.0
        %1087 = vmatpush1.msra.mxu0 0.0
        %1088 = vmatprep.subr.mxu0 0.0
        %1089 = vmatpush1.msra.mxu0 0.0
        %1090 = vmatprep.subr.mxu0 0.0
        %1091 = vmatpush1.msra.mxu0 0.0
        %1092 = vmatprep.subr.mxu0 0.0
        %1093 = vmatpush1.msra.mxu0 0.0
        %1094 = vmatprep.subr.mxu0 0.0
        %1095 = vmatpush1.msra.mxu0 0.0
        %1096 = vmatprep.subr.mxu0 0.0
        %1097 = vmatpush1.msra.mxu0 0.0
        %1098 = vmatprep.subr.mxu0 0.0
        %1099 = vmatpush1.msra.mxu0 0.0
        %1100 = vmatprep.subr.mxu0 0.0
        %1101 = vmatpush1.msra.mxu0 0.0
        %1102 = vmatprep.subr.mxu0 0.0
        %1103 = vmatpush1.msra.mxu0 0.0
        %1104 = vmatprep.subr.mxu0 0.0
        %1105 = vmatpush1.msra.mxu0 0.0
        %1106 = vmatprep.subr.mxu0 0.0
        %1107 = vmatpush1.msra.mxu0 0.0
        %1108 = vmatprep.subr.mxu0 0.0
        %1109 = vmatpush1.msra.mxu0 0.0
        %1110 = vmatprep.subr.mxu0 0.0
        %1111 = vmatpush1.msra.mxu0 0.0
        %1112 = vmatprep.subr.mxu0 0.0
        %1113 = vmatpush1.msra.mxu0 0.0
        %1114 = vmatprep.subr.mxu0 0.0
        %1115 = vmatpush1.msra.mxu0 0.0
        %1116 = vmatprep.subr.mxu0 0.0
        %1117 = vmatpush1.msra.mxu0 0.0
        %1118 = vmatprep.subr.mxu0 0.0
        %1119 = vmatpush1.msra.mxu0 0.0
        %1120 = vmatprep.subr.mxu0 0.0
        %1121 = vmatpush1.msra.mxu0 0.0
        %1122 = vmatprep.subr.mxu0 0.0
        %1123 = vmatpush1.msra.mxu0 0.0
        %1124 = vmatprep.subr.mxu0 0.0
        %1125 = vmatpush1.msra.mxu0 0.0
        %1126 = vmatprep.subr.mxu0 0.0
        %1127 = vmatpush1.msra.mxu0 0.0
        %1128 = vmatprep.mubr.f32.mxu0 0.0
        %1129 = vmatmul.mubr.f32.gmra.mrb[0].mxu0 %v1062
        %v1130 = vpop.f32.mrb[0].mxu0
        %v1131 = vadd.f32 0.0, %v1130
        %v1132 = vpop.f32.mrb[0].mxu0
        %1133 = vdwg.mxu0
        %v1134 = vsub.f32 %v1131, %v193
        %v1135 = vmul.f32 %v1134, %v1134
        %v1137 = vsel %vm483, %v423, 0
        %v1140 = vsel %vm483, %v424, 0
        %v1143 = vsel %vm483, %v425, 0
        %v1146 = vsel %vm483, %v426, 0
        %v1149 = vsel %vm483, %v427, 0
        %v1152 = vsel %vm483, %v428, 0
        %v1155 = vsel %vm483, %v429, 0
        %v1158 = vsel %vm483, %v430, 0
        %v1161 = vsel %vm483, %v431, 0
        %v1164 = vsel %vm483, %v432, 0
        %v1167 = vsel %vm483, %v433, 0
        %v1170 = vsel %vm483, %v434, 0
        %v1173 = vsel %vm483, %v435, 0
        %v1176 = vsel %vm483, %v436, 0
        %v1179 = vsel %vm483, %v437, 0
        %v1182 = vsel %vm483, %v438, 0
        %1184 = vmatprep.subr.mxu0 0.0
        %1185 = vmatpush1.msra.mxu0 %v1135
        %1186 = vmatprep.subr.mxu0 0.0
        %1187 = vmatpush1.msra.mxu0 0.0
        %1188 = vmatprep.subr.mxu0 0.0
        %1189 = vmatpush1.msra.mxu0 0.0
        %1190 = vmatprep.subr.mxu0 0.0
        %1191 = vmatpush1.msra.mxu0 0.0
        %1192 = vmatprep.subr.mxu0 0.0
        %1193 = vmatpush1.msra.mxu0 0.0
        %1194 = vmatprep.subr.mxu0 0.0
        %1195 = vmatpush1.msra.mxu0 0.0
        %1196 = vmatprep.subr.mxu0 0.0
        %1197 = vmatpush1.msra.mxu0 0.0
        %1198 = vmatprep.subr.mxu0 0.0
        %1199 = vmatpush1.msra.mxu0 0.0
        %1200 = vmatprep.subr.mxu0 0.0
        %1201 = vmatpush1.msra.mxu0 0.0
        %1202 = vmatprep.subr.mxu0 0.0
        %1203 = vmatpush1.msra.mxu0 0.0
        %1204 = vmatprep.subr.mxu0 0.0
        %1205 = vmatpush1.msra.mxu0 0.0
        %1206 = vmatprep.subr.mxu0 0.0
        %1207 = vmatpush1.msra.mxu0 0.0
        %1208 = vmatprep.subr.mxu0 0.0
        %1209 = vmatpush1.msra.mxu0 0.0
        %1210 = vmatprep.subr.mxu0 0.0
        %1211 = vmatpush1.msra.mxu0 0.0
        %1212 = vmatprep.subr.mxu0 0.0
        %1213 = vmatpush1.msra.mxu0 0.0
        %1214 = vmatprep.subr.mxu0 0.0
        %1215 = vmatpush1.msra.mxu0 0.0
        %1216 = vmatprep.subr.mxu0 0.0
        %1217 = vmatpush1.msra.mxu0 0.0
        %1218 = vmatprep.subr.mxu0 0.0
        %1219 = vmatpush1.msra.mxu0 0.0
        %1220 = vmatprep.subr.mxu0 0.0
        %1221 = vmatpush1.msra.mxu0 0.0
        %1222 = vmatprep.subr.mxu0 0.0
        %1223 = vmatpush1.msra.mxu0 0.0
        %1224 = vmatprep.subr.mxu0 0.0
        %1225 = vmatpush1.msra.mxu0 0.0
        %1226 = vmatprep.subr.mxu0 0.0
        %1227 = vmatpush1.msra.mxu0 0.0
        %1228 = vmatprep.subr.mxu0 0.0
        %1229 = vmatpush1.msra.mxu0 0.0
        %1230 = vmatprep.subr.mxu0 0.0
        %1231 = vmatpush1.msra.mxu0 0.0
        %1232 = vmatprep.subr.mxu0 0.0
        %1233 = vmatpush1.msra.mxu0 0.0
        %1234 = vmatprep.subr.mxu0 0.0
        %1235 = vmatpush1.msra.mxu0 0.0
        %1236 = vmatprep.subr.mxu0 0.0
        %1237 = vmatpush1.msra.mxu0 0.0
        %1238 = vmatprep.subr.mxu0 0.0
        %1239 = vmatpush1.msra.mxu0 0.0
        %1240 = vmatprep.subr.mxu0 0.0
        %1241 = vmatpush1.msra.mxu0 0.0
        %1242 = vmatprep.subr.mxu0 0.0
        %1243 = vmatpush1.msra.mxu0 0.0
        %1244 = vmatprep.subr.mxu0 0.0
        %1245 = vmatpush1.msra.mxu0 0.0
        %1246 = vmatprep.subr.mxu0 0.0
        %1247 = vmatpush1.msra.mxu0 0.0
        %1248 = vmatprep.mubr.f32.mxu0 0.0
        %1249 = vmatmul.mubr.f32.gmra.mrb[0].mxu0 %v1137
        %v1250 = vpop.f32.mrb[0].mxu0
        %v1251 = vadd.f32 0.0, %v1250
        %v1252 = vpop.f32.mrb[0].mxu0
        %1253 = vmatprep.mubr.f32.mxu0 0.0
        %1254 = vmatmul.mubr.f32.gmra.mrb[0].mxu0 %v1140
        %v1255 = vpop.f32.mrb[0].mxu0
        %v1256 = vadd.f32 0.0, %v1255
        %v1257 = vpop.f32.mrb[0].mxu0
        %1258 = vmatprep.mubr.f32.mxu0 0.0
        %1259 = vmatmul.mubr.f32.gmra.mrb[0].mxu0 %v1143
        %v1260 = vpop.f32.mrb[0].mxu0
        %v1261 = vadd.f32 0.0, %v1260
        %v1262 = vpop.f32.mrb[0].mxu0
        %1263 = vmatprep.mubr.f32.mxu0 0.0
        %1264 = vmatmul.mubr.f32.gmra.mrb[0].mxu0 %v1146
        %v1265 = vpop.f32.mrb[0].mxu0
        %v1266 = vadd.f32 0.0, %v1265
        %v1267 = vpop.f32.mrb[0].mxu0
        %1268 = vmatprep.mubr.f32.mxu0 0.0
        %1269 = vmatmul.mubr.f32.gmra.mrb[0].mxu0 %v1149
        %v1270 = vpop.f32.mrb[0].mxu0
        %v1271 = vadd.f32 0.0, %v1270
        %v1272 = vpop.f32.mrb[0].mxu0
        %1273 = vmatprep.mubr.f32.mxu0 0.0
        %1274 = vmatmul.mubr.f32.gmra.mrb[0].mxu0 %v1152
        %v1275 = vpop.f32.mrb[0].mxu0
        %v1276 = vadd.f32 0.0, %v1275
        %v1277 = vpop.f32.mrb[0].mxu0
        %1278 = vmatprep.mubr.f32.mxu0 0.0
        %1279 = vmatmul.mubr.f32.gmra.mrb[0].mxu0 %v1155
        %v1280 = vpop.f32.mrb[0].mxu0
        %v1281 = vadd.f32 0.0, %v1280
        %v1282 = vpop.f32.mrb[0].mxu0
        %1283 = vmatprep.mubr.f32.mxu0 0.0
        %1284 = vmatmul.mubr.f32.gmra.mrb[0].mxu0 %v1158
        %v1285 = vpop.f32.mrb[0].mxu0
        %v1286 = vadd.f32 0.0, %v1285
        %v1287 = vpop.f32.mrb[0].mxu0
        %1288 = vmatprep.mubr.f32.mxu0 0.0
        %1289 = vmatmul.mubr.f32.gmra.mrb[0].mxu0 %v1161
        %v1290 = vpop.f32.mrb[0].mxu0
        %v1291 = vadd.f32 0.0, %v1290
        %v1292 = vpop.f32.mrb[0].mxu0
        %1293 = vmatprep.mubr.f32.mxu0 0.0
        %1294 = vmatmul.mubr.f32.gmra.mrb[0].mxu0 %v1164
        %v1295 = vpop.f32.mrb[0].mxu0
        %v1296 = vadd.f32 0.0, %v1295
        %v1297 = vpop.f32.mrb[0].mxu0
        %1298 = vmatprep.mubr.f32.mxu0 0.0
        %1299 = vmatmul.mubr.f32.gmra.mrb[0].mxu0 %v1167
        %v1300 = vpop.f32.mrb[0].mxu0
        %v1301 = vadd.f32 0.0, %v1300
        %v1302 = vpop.f32.mrb[0].mxu0
        %1303 = vmatprep.mubr.f32.mxu0 0.0
        %1304 = vmatmul.mubr.f32.gmra.mrb[0].mxu0 %v1170
        %v1305 = vpop.f32.mrb[0].mxu0
        %v1306 = vadd.f32 0.0, %v1305
        %v1307 = vpop.f32.mrb[0].mxu0
        %1308 = vmatprep.mubr.f32.mxu0 0.0
        %1309 = vmatmul.mubr.f32.gmra.mrb[0].mxu0 %v1173
        %v1310 = vpop.f32.mrb[0].mxu0
        %v1311 = vadd.f32 0.0, %v1310
        %v1312 = vpop.f32.mrb[0].mxu0
        %1313 = vmatprep.mubr.f32.mxu0 0.0
        %1314 = vmatmul.mubr.f32.gmra.mrb[0].mxu0 %v1176
        %v1315 = vpop.f32.mrb[0].mxu0
        %v1316 = vadd.f32 0.0, %v1315
        %v1317 = vpop.f32.mrb[0].mxu0
        %1318 = vmatprep.mubr.f32.mxu0 0.0
        %1319 = vmatmul.mubr.f32.gmra.mrb[0].mxu0 %v1179
        %v1320 = vpop.f32.mrb[0].mxu0
        %v1321 = vadd.f32 0.0, %v1320
        %v1322 = vpop.f32.mrb[0].mxu0
        %1323 = vmatprep.mubr.f32.mxu0 0.0
        %1324 = vmatmul.mubr.f32.gmra.mrb[0].mxu0 %v1182
        %v1325 = vpop.f32.mrb[0].mxu0
        %v1326 = vadd.f32 0.0, %v1325
        %v1327 = vpop.f32.mrb[0].mxu0
        %1328 = vdwg.mxu0
        %1329 = vxpose.xlu0.b32.start [1/16] %v1251, 128
        %1330 = vxpose.xlu0.b32.cont [2/16] %v1256, 128
        %1331 = vxpose.xlu0.b32.cont [3/16] %v1261, 128
        %1332 = vxpose.xlu0.b32.cont [4/16] %v1266, 128
        %1333 = vxpose.xlu0.b32.cont [5/16] %v1271, 128
        %1334 = vxpose.xlu0.b32.cont [6/16] %v1276, 128
        %1335 = vxpose.xlu0.b32.cont [7/16] %v1281, 128
        %1336 = vxpose.xlu0.b32.cont [8/16] %v1286, 128
        %1337 = vxpose.xlu0.b32.cont [9/16] %v1291, 128
        %1338 = vxpose.xlu0.b32.cont [10/16] %v1296, 128
        %1339 = vxpose.xlu0.b32.cont [11/16] %v1301, 128
        %1340 = vxpose.xlu0.b32.cont [12/16] %v1306, 128
        %1341 = vxpose.xlu0.b32.cont [13/16] %v1311, 128
        %1342 = vxpose.xlu0.b32.cont [14/16] %v1316, 128
        %1343 = vxpose.xlu0.b32.cont [15/16] %v1321, 128
        %1344 = vxpose.xlu0.b32.end [16/16] %v1326, 128
        %v1345 = vpop.trf.xlu0
        %v1346 = vpop.trf.xlu0
        %v1347 = vpop.trf.xlu0
        %v1348 = vpop.trf.xlu0
        %v1349 = vpop.trf.xlu0
        %v1350 = vpop.trf.xlu0
        %v1351 = vpop.trf.xlu0
        %v1352 = vpop.trf.xlu0
        %v1353 = vpop.trf.xlu0
        %v1354 = vpop.trf.xlu0
        %v1355 = vpop.trf.xlu0
        %v1356 = vpop.trf.xlu0
        %v1357 = vpop.trf.xlu0
        %v1358 = vpop.trf.xlu0
        %v1359 = vpop.trf.xlu0
        %v1360 = vpop.trf.xlu0
        %v1362 = vrot.slane %v1345, 7
        %vm1364 = vcmask 1040384
        %v1365 = vsel %vm1364, %v887, %v1362
        %1366 = vst [vmem:[%s181] sm:$0x3] %v1365
        %s1367 = sand.u32 %s89, 1
        %s1368 = scalar_lea.sflag [#allocation7], %s1367
        %s1369 = sand.u32 %s89, 1
        %s1370 = smul.addr %s1369, 2
        %s1371 = scalar_lea.vmem [#allocation8], %s1370
        // Predicated region
        $region33: #{tpu_custom_call.1} parent=27 // pred_check
          %p1372 = pneg %p99
        $region34: #{tpu_custom_call.1} parent=27 // pred_check_branch
          %1374 = sbr.rel (%p1372) target = $region36
        $region35: #{tpu_custom_call.1} parent=27 // pred_region
          %s1376 = ssub.s32 32, 32
          %1377 = vsyncadd %s1368, %s1376
          %s1378 = smul.addr %s29, 32
          %s1379 = scalar_lea.hbm %s4, %s1378
          %s1381 = sshll.u32 %s1371, 4
          %s1382 = int_to_ptr.vmem [resolvable:$true] %s1381
          %1384 = dma.vmem_to_hbm [thread:$0]  %s1382, 32, %s1379, %s1368
        $region36: #{tpu_custom_call.1} parent=27 // pred_fallthru
          _
      $region28: #{tpu_custom_call.1} parent=5 // pred_fallthru
        _
      %p1385 = scmp.le.s32.totalorder 2, %s24
      // Predicated region
      $region37: #{tpu_custom_call.1} parent=5 // pred_check
        %p1386 = pneg %p1385
      $region38: #{tpu_custom_call.1} parent=5 // pred_check_branch
        %1388 = sbr.rel (%p1386) target = $region40
      $region39: #{tpu_custom_call.1} parent=5 // pred_region
        %s1389 = ssub.s32 %s24, 2
        // Predicated region
        $region41: #{tpu_custom_call.1} parent=39 // pred_check
          %p1390 = pneg %p105
        $region42: #{tpu_custom_call.1} parent=39 // pred_check_branch
          %1392 = sbr.rel (%p1390) target = $region44
        $region43: #{tpu_custom_call.1} parent=39 // pred_region
          %s1393 = sand.u32 %s90, 1
          %s1394 = scalar_lea.sflag [#allocation7], %s1393
          %s1395 = sand.u32 %s90, 1
          %s1396 = smul.addr %s1395, 2
          %s1397 = scalar_lea.vmem [#allocation8], %s1396
          %1398 = dma.done %s1394, 32
        $region44: #{tpu_custom_call.1} parent=39 // pred_fallthru
          _
      $region40: #{tpu_custom_call.1} parent=5 // pred_fallthru
        _
    $region6: #{tpu_custom_call.1} parent=1 // loop_footer
      %s28 = sadd.s32 1, %s24
    $region7: #{tpu_custom_call.1} parent=1 // loop_footer_branch
      %23 = sbr.rel target = $region3
    $region8: #{tpu_custom_call.1} parent=1 // loop_exit
      _
    %1399 = vsyncpa [#allocation6], 1
    %s1400 = scalar_lea.sflag [#allocation6], 1
    %1401 = vsyncpa %s1400, 1
    %1402 = vsyncpa [#allocation7], 1
    %s1403 = scalar_lea.sflag [#allocation7], 1
    %1404 = vsyncpa %s1403, 1

</llo_original>
